<compile_context>
chip_gen: v7x
topology: tpu7x:2x2x1
jax: 0.10.0
libtpu: 0.0.40
codegen_flags: <defaults>
</compile_context>

<pallas_src>
import jax
import jax.numpy as jnp
import numpy as np
from jax.experimental import pallas as pl
from jax.experimental.pallas import tpu as pltpu

# ----------------------------- problem sizes (small, synthetic) -----------------------------
B = 2          # batch
C_IN = 4       # input channels
H = W = 16     # spatial
K = 3          # conv kernel (3x3, pad=1)
FEAT = 32      # encoder feature dim (== base_model.fc.in_features)
HID = 512      # projection hidden dim (nn.Linear(in_features, 512))
PROJ = 128     # projection_dim
HW = H * W
KK = K * K * C_IN          # 36  logical im2col width
KPAD = 128                 # im2col width zero-padded to a full lane width

# packed-buffer layout
W2_ROWS = HID                                  # wpk rows 0:512     = w2      [HID, PROJ]
                                               # wpk rows 512:640   = wc_ext  [KPAD, PROJ] (wc in [0:36, 0:FEAT])
BOFF_C, BOFF_1, BOFF_2 = 0, 128, 128 + HID     # 128-aligned bias offsets
BIAS_LEN = 128 + HID + PROJ                    # 768


# ----------------------------- Pallas kernel (whole batch, one grid step) -----------------------
def simclr_kernel(p_ref, w1_ref, wpk_ref, b_ref, out_ref):
    # ---- conv: single lane-dense MXU matmul over the whole batch ------------------------------
    # p_ref: [B*HW, 128] im2col patches (cols 36: are zero); wc_ext rows 36: are zero.
    h = jnp.dot(p_ref[...], wpk_ref[W2_ROWS:W2_ROWS + KPAD, :],
                preferred_element_type=jnp.float32)                        # [B*HW, 128]
    h = jnp.maximum(h + b_ref[:, BOFF_C:BOFF_C + KPAD], 0.0)               # bias+ReLU (cols>=FEAT stay 0)

    # ---- global average pool per image: in-kernel sublane reduction ---------------------------
    parts = [jnp.sum(h[b * HW:(b + 1) * HW, :], axis=0, keepdims=True) for b in range(B)]
    f = jnp.concatenate(parts, axis=0) * (1.0 / HW)                        # [B, 128] (cols>=FEAT are 0)

    # ---- projection head: Linear -> ReLU -> Linear (M = B) ------------------------------------
    g = jnp.dot(f, w1_ref[...], preferred_element_type=jnp.float32)        # [B, 512] (zero rows of w1_ext kill pad cols)
    g = jnp.maximum(g + b_ref[:, BOFF_1:BOFF_1 + HID], 0.0)
    z = jnp.dot(g, wpk_ref[0:W2_ROWS, :], preferred_element_type=jnp.float32)
    out_ref[...] = (z + b_ref[:, BOFF_2:BOFF_2 + PROJ]).astype(out_ref.dtype)   # [B, 128]


# ----------------------------- one-time parameter packing -----------------------------
def pack_params(params):
    """Pack weights/biases into 3 lane-dense, tile-aligned buffers:
       w1_ext [128,512] (rows FEAT: zero), wpk [640,128] = [w2 ; wc_ext], bias [1,768]."""
    wc, bc, w1, b1, w2, b2 = params
    wc_ext = jnp.zeros((KPAD, PROJ), jnp.float32).at[:KK, :FEAT].set(wc)   # [128, 128]
    wpk = jnp.concatenate([w2, wc_ext], axis=0)                            # [640, 128]
    w1_ext = jnp.zeros((KPAD, HID), jnp.float32).at[:FEAT, :].set(w1)      # [128, 512]
    bcat = jnp.zeros((1, BIAS_LEN), jnp.float32)
    bcat = bcat.at[:, BOFF_C:BOFF_C + FEAT].set(bc)
    bcat = bcat.at[:, BOFF_1:BOFF_1 + HID].set(b1)
    bcat = bcat.at[:, BOFF_2:BOFF_2 + PROJ].set(b2)
    return w1_ext, wpk, bcat


# ----------------------------- forward wrapper -----------------------------
@jax.jit
def simclr_forward(x_nchw, packed):
    """Fused SimCLR forward. x_nchw: [B, C_IN, H, W] float32."""
    w1_ext, wpk, bcat = packed

    # Tiny wrapper-side im2col (lane-dense [B*HW, 128] patch block, zero-padded 36->128).
    # allow_input_fusion below lets XLA fuse this producer chain into the pallas input DMA.
    x = jnp.transpose(x_nchw, (0, 2, 3, 1))                                # [B, H, W, C]
    xp = jnp.pad(x, ((0, 0), (1, 1), (1, 1), (0, 0)))                      # [B, H+2, W+2, C]
    cols = [xp[:, di:di + H, dj:dj + W, :] for di in range(K) for dj in range(K)]
    patches = jnp.stack(cols, axis=3).reshape(B * HW, KK)                  # [512, 36]
    patches = jnp.pad(patches, ((0, 0), (0, KPAD - KK)))                   # [512, 128]

    flops = 2 * (B * HW * KK * FEAT + B * FEAT * HID + B * HID * PROJ)
    bytes_accessed = 4 * (B * HW * KPAD + KPAD * HID
                          + (W2_ROWS + KPAD) * PROJ + BIAS_LEN + B * PROJ)

    return pl.pallas_call(
        simclr_kernel,
        out_shape=jax.ShapeDtypeStruct((B, PROJ), jnp.float32),
        grid=(1,),                                                         # whole batch in one step
        in_specs=[
            pl.BlockSpec((B * HW, KPAD), lambda i: (0, 0)),
            pl.BlockSpec((KPAD, HID), lambda i: (0, 0)),
            pl.BlockSpec((W2_ROWS + KPAD, PROJ), lambda i: (0, 0)),
            pl.BlockSpec((1, BIAS_LEN), lambda i: (0, 0)),
        ],
        out_specs=pl.BlockSpec((B, PROJ), lambda i: (0, 0)),
        compiler_params=pltpu.CompilerParams(
            dimension_semantics=("arbitrary",),
            allow_input_fusion=[True, False, False, False],
        ),
        cost_estimate=pl.CostEstimate(flops=flops, transcendentals=0,
                                      bytes_accessed=bytes_accessed),
    )(patches, w1_ext, wpk, bcat)


# ----------------------------- pure-JAX reference (for verification) -----------------------------
def simclr_reference(x_nchw, params):
    wc, bc, w1, b1, w2, b2 = params
    x = jnp.transpose(x_nchw, (0, 2, 3, 1))
    xp = jnp.pad(x, ((0, 0), (1, 1), (1, 1), (0, 0)))
    cols = []
    for di in range(K):
        for dj in range(K):
            cols.append(xp[:, di:di + H, dj:dj + W, :])
    patches = jnp.stack(cols, axis=3).reshape(B * H * W, K * K * C_IN)
    h = jax.nn.relu(patches @ wc + bc)                 # conv + ReLU
    f = h.reshape(B, H * W, FEAT).mean(axis=1)         # global avg pool
    g = jax.nn.relu(f @ w1 + b1)                       # Linear -> ReLU
    return g @ w2 + b2                                 # Linear


# ----------------------------- deterministic parameter init -----------------------------
def make_params(key):
    k = jax.random.split(key, 6)
    fan_c = K * K * C_IN
    wc = jax.random.normal(k[0], (fan_c, FEAT), jnp.float32) / np.sqrt(fan_c)
    bc = (jax.random.normal(k[1], (1, FEAT), jnp.float32) * 0.01)
    w1 = jax.random.normal(k[2], (FEAT, HID), jnp.float32) / np.sqrt(FEAT)
    b1 = (jax.random.normal(k[3], (1, HID), jnp.float32) * 0.01)
    w2 = jax.random.normal(k[4], (HID, PROJ), jnp.float32) / np.sqrt(HID)
    b2 = (jax.random.normal(k[5], (1, PROJ), jnp.float32) * 0.01)
    return wc, bc, w1, b1, w2, b2


if __name__ == "__main__":
    key = jax.random.PRNGKey(0)
    pkey, xkey = jax.random.split(key)
    params = make_params(pkey)
    packed = pack_params(params)                                # one-time packing (hoisted)
    x = jax.random.normal(xkey, (B, C_IN, H, W), jnp.float32)   # PyTorch-style NCHW input

    out = jax.block_until_ready(simclr_forward(x, packed))
    ref = jax.block_until_ready(simclr_reference(x, params))

    assert out.shape == (B, PROJ), out.shape
    assert jnp.allclose(out, ref, atol=1e-4, rtol=1e-4), float(jnp.max(jnp.abs(out - ref)))
    print("KERNEL_OK")
</pallas_src>

<mosaic_0001>
module attributes {stable_mosaic.version = 11 : i64} {
  func.func @simclr_kernel(%arg0: i32, %arg1: memref<512x128xf32, #tpu.memory_space<vmem>>, %arg2: memref<128x512xf32, #tpu.memory_space<vmem>>, %arg3: memref<640x128xf32, #tpu.memory_space<vmem>>, %arg4: memref<1x768xf32, #tpu.memory_space<vmem>>, %arg5: memref<2x128xf32, #tpu.memory_space<vmem>>) attributes {dimension_semantics = [#tpu.dimension_semantics<arbitrary>], iteration_bounds = array<i64: 1>, scalar_prefetch = 0 : i64, scratch_operands = 0 : i64, tpu.core_type = #tpu.core_type<tc>, window_params = [{pipeline_mode = #tpu.pipeline_mode<synchronous>, transform_indices = @transform_0, window_bounds = array<i64: 512, 128>}, {pipeline_mode = #tpu.pipeline_mode<synchronous>, transform_indices = @transform_1, window_bounds = array<i64: 128, 512>}, {pipeline_mode = #tpu.pipeline_mode<synchronous>, transform_indices = @transform_2, window_bounds = array<i64: 640, 128>}, {pipeline_mode = #tpu.pipeline_mode<synchronous>, transform_indices = @transform_3, window_bounds = array<i64: 1, 768>}, {pipeline_mode = #tpu.pipeline_mode<synchronous>, transform_indices = @transform_4, window_bounds = array<i64: 2, 128>}]} {
    %c0 = arith.constant 0 : index
    %c0_0 = arith.constant 0 : index
    %0 = vector.load %arg1[%c0, %c0_0] : memref<512x128xf32, #tpu.memory_space<vmem>>, vector<512x128xf32>
    %c512 = arith.constant 512 : index
    %c0_1 = arith.constant 0 : index
    %1 = vector.load %arg3[%c512, %c0_1] : memref<640x128xf32, #tpu.memory_space<vmem>>, vector<128x128xf32>
    %cst = arith.constant dense<0.000000e+00> : vector<512x128xf32>
    %2 = tpu.matmul %0, %1, %cst {dimension_numbers = #tpu.dot_dimension_numbers<[1], [0], [0], [1], [0, 0, 1, 1], [], []>} : vector<512x128xf32>, vector<128x128xf32>, vector<512x128xf32> -> vector<512x128xf32>
    %c0_2 = arith.constant 0 : index
    %c0_3 = arith.constant 0 : index
    %3 = vector.load %arg4[%c0_2, %c0_3] : memref<1x768xf32, #tpu.memory_space<vmem>>, vector<1x128xf32>
    %4 = vector.broadcast %3 : vector<1x128xf32> to vector<512x128xf32>
    %5 = arith.addf %2, %4 : vector<512x128xf32>
    %cst_4 = arith.constant 0.000000e+00 : f32
    %6 = vector.broadcast %cst_4 : f32 to vector<512x128xf32>
    %7 = arith.maximumf %5, %6 : vector<512x128xf32>
    %8 = vector.extract_strided_slice %7 {offsets = [0, 0], sizes = [256, 128], strides = [1, 1]} : vector<512x128xf32> to vector<256x128xf32>
    %cst_5 = arith.constant dense<0.000000e+00> : vector<128xf32>
    %9 = vector.multi_reduction <add>, %8, %cst_5 [0] : vector<256x128xf32> to vector<128xf32>
    %10 = vector.shape_cast %9 : vector<128xf32> to vector<1x128xf32>
    %11 = vector.extract_strided_slice %7 {offsets = [256, 0], sizes = [256, 128], strides = [1, 1]} : vector<512x128xf32> to vector<256x128xf32>
    %cst_6 = arith.constant dense<0.000000e+00> : vector<128xf32>
    %12 = vector.multi_reduction <add>, %11, %cst_6 [0] : vector<256x128xf32> to vector<128xf32>
    %13 = vector.shape_cast %12 : vector<128xf32> to vector<1x128xf32>
    %14 = tpu.concatenate %10, %13 in 0 : vector<1x128xf32>, vector<1x128xf32> -> vector<2x128xf32>
    %cst_7 = arith.constant 3.906250e-03 : f32
    %15 = vector.broadcast %cst_7 : f32 to vector<2x128xf32>
    %16 = arith.mulf %14, %15 : vector<2x128xf32>
    %c0_8 = arith.constant 0 : index
    %c0_9 = arith.constant 0 : index
    %17 = vector.load %arg2[%c0_8, %c0_9] : memref<128x512xf32, #tpu.memory_space<vmem>>, vector<128x512xf32>
    %cst_10 = arith.constant dense<0.000000e+00> : vector<2x512xf32>
    %18 = tpu.matmul %16, %17, %cst_10 {dimension_numbers = #tpu.dot_dimension_numbers<[1], [0], [0], [1], [0, 0, 1, 1], [], []>} : vector<2x128xf32>, vector<128x512xf32>, vector<2x512xf32> -> vector<2x512xf32>
    %c0_11 = arith.constant 0 : index
    %c128 = arith.constant 128 : index
    %19 = vector.load %arg4[%c0_11, %c128] : memref<1x768xf32, #tpu.memory_space<vmem>>, vector<1x512xf32>
    %20 = vector.broadcast %19 : vector<1x512xf32> to vector<2x512xf32>
    %21 = arith.addf %18, %20 : vector<2x512xf32>
    %cst_12 = arith.constant 0.000000e+00 : f32
    %22 = vector.broadcast %cst_12 : f32 to vector<2x512xf32>
    %23 = arith.maximumf %21, %22 : vector<2x512xf32>
    %c0_13 = arith.constant 0 : index
    %c0_14 = arith.constant 0 : index
    %24 = vector.load %arg3[%c0_13, %c0_14] : memref<640x128xf32, #tpu.memory_space<vmem>>, vector<512x128xf32>
    %cst_15 = arith.constant dense<0.000000e+00> : vector<2x128xf32>
    %25 = tpu.matmul %23, %24, %cst_15 {dimension_numbers = #tpu.dot_dimension_numbers<[1], [0], [0], [1], [0, 0, 1, 1], [], []>} : vector<2x512xf32>, vector<512x128xf32>, vector<2x128xf32> -> vector<2x128xf32>
    %c0_16 = arith.constant 0 : index
    %c640 = arith.constant 640 : index
    %26 = vector.load %arg4[%c0_16, %c640] : memref<1x768xf32, #tpu.memory_space<vmem>>, vector<1x128xf32>
    %27 = vector.broadcast %26 : vector<1x128xf32> to vector<2x128xf32>
    %28 = arith.addf %25, %27 : vector<2x128xf32>
    %c0_17 = arith.constant 0 : index
    %c0_18 = arith.constant 0 : index
    %29 = vector.load %arg5[%c0_17, %c0_18] : memref<2x128xf32, #tpu.memory_space<vmem>>, vector<2x128xf32>
    tpu.vector_store %arg5[%c0_17, %c0_18], %28 {strides = array<i32>} : memref<2x128xf32, #tpu.memory_space<vmem>>, vector<2x128xf32>,
    return
  }
  func.func @transform_0(%arg0: i32) -> (i32, i32) {
    %c0_i32 = arith.constant 0 : i32
    %c0_i32_0 = arith.constant 0 : i32
    %c0_i32_1 = arith.constant 0 : i32
    return %c0_i32, %c0_i32_0 : i32, i32
  }
  func.func @transform_1(%arg0: i32) -> (i32, i32) {
    %c0_i32 = arith.constant 0 : i32
    %c0_i32_0 = arith.constant 0 : i32
    %c0_i32_1 = arith.constant 0 : i32
    return %c0_i32, %c0_i32_0 : i32, i32
  }
  func.func @transform_2(%arg0: i32) -> (i32, i32) {
    %c0_i32 = arith.constant 0 : i32
    %c0_i32_0 = arith.constant 0 : i32
    %c0_i32_1 = arith.constant 0 : i32
    return %c0_i32, %c0_i32_0 : i32, i32
  }
  func.func @transform_3(%arg0: i32) -> (i32, i32) {
    %c0_i32 = arith.constant 0 : i32
    %c0_i32_0 = arith.constant 0 : i32
    %c0_i32_1 = arith.constant 0 : i32
    return %c0_i32, %c0_i32_0 : i32, i32
  }
  func.func @transform_4(%arg0: i32) -> (i32, i32) {
    %c0_i32 = arith.constant 0 : i32
    %c0_i32_0 = arith.constant 0 : i32
    %c0_i32_1 = arith.constant 0 : i32
    return %c0_i32, %c0_i32_0 : i32, i32
  }
}

</mosaic_0001>

<llo_original>
// kernel: simclr_forward.2
$region0: #{simclr_forward.2}
  #allocation0 [shape = 'u32[]', space=smem, size = 0x4, offset = 0x4, fixed_abs, tag = 'smem constant byte address 0x4 - core index']
  #allocation1 [shape = 'u32[144,128]{1,0:T(1,128)}', space=vmem, size = 0x12000, scoped, tag = 'internal scratch']
  #allocation2 [shape = 'u32[2048]{0}', space=vmem, size = 0x2000, scoped, tag = 'scoped memory for simclr_forward.2']
  #allocation3 [shape = 'u32[2048]{0}', space=vmem, size = 0x2000, scoped, tag = 'scoped memory for simclr_forward.2']
  #allocation4 [shape = 'u32[2048]{0}', space=vmem, size = 0x2000, scoped, tag = 'scoped memory for simclr_forward.2']
  #allocation5 [shape = 'u32[2048]{0}', space=vmem, size = 0x2000, scoped, tag = 'scoped memory for simclr_forward.2']
  #allocation6 [shape = 'u32[2048]{0}', space=vmem, size = 0x2000, scoped, tag = 'scoped memory for simclr_forward.2']
  %s0 = inlined_call_operand.vmem [shape: f32[128,512], index: 0, kind: input, shape index: {}]
  %s1 = inlined_call_operand.vmem [shape: f32[640,128], index: 1, kind: input, shape index: {}]
  %s2 = inlined_call_operand.vmem [shape: f32[1,768], index: 2, kind: input, shape index: {}]
  %s3 = inlined_call_operand.vmem [shape: f32[512,36], index: 3, kind: input, shape index: {}]
  %s4 = inlined_call_operand.<no memory space> [shape: f32[], index: 4, kind: input, shape index: {}]
  %s5 = inlined_call_operand.hbm [shape: f32[2,128], index: 5, kind: output, shape index: {}]
  %s6 = sld [smem:[#allocation0]]
  $region26: #{simclr_forward.2} parent=0
    _
  %s8 = ssub.s32 1, %s6
  %s9 = scalar_select 0, %s8, %s6
  %v10 = vstv %s4
  $region1: #{simclr_forward.2} parent=0
    #allocation7 [shape = 'u8[1024]{0}', space=vmem, size = 0x400, scoped, tag = 'output window, operand 0, single buffered']
    #allocation8 [shape = 's32[1]{0}', space=sflag, size = 0x4, scoped, tag = 'scoped memory for simclr_forward.2']
    #allocation9 [shape = 'u8[262144]{0}', space=vmem, size = 0x40000, dematerialized = true, scoped, tag = 'FusionAdapter Buffer %fusion.1 = f32[512,128]{1,0:T(8,128)} fusion(%param_3.1, %param_4), kind=kLoop, calls=%fused_computation.1.clone, metadata={op_name="jit(simclr_forward)/jit(_pad)/pad" stack_frame_id=11}']
    %11 = vsyncpa [#allocation8], 0
    // Predicated region
    $region2: #{simclr_forward.2} parent=1 // pred_check
      _
    $region3: #{simclr_forward.2} parent=1 // pred_check_branch
      %13 = sbr.rel (0) target = $region5
    $region4: #{simclr_forward.2} parent=1 // pred_region
      _
    $region5: #{simclr_forward.2} parent=1 // pred_fallthru
      _
    // Predicated region
    $region6: #{simclr_forward.2} parent=1 // pred_check
      _
    $region7: #{simclr_forward.2} parent=1 // pred_check_branch
      %15 = sbr.rel (0) target = $region9
    $region8: #{simclr_forward.2} parent=1 // pred_region
      _
    $region9: #{simclr_forward.2} parent=1 // pred_fallthru
      _
    // Predicated region
    $region10: #{simclr_forward.2} parent=1 // pred_check
      _
    $region11: #{simclr_forward.2} parent=1 // pred_check_branch
      %17 = sbr.rel (0) target = $region13
    $region12: #{simclr_forward.2} parent=1 // pred_region
      _
    $region13: #{simclr_forward.2} parent=1 // pred_fallthru
      _
    // Predicated region
    $region14: #{simclr_forward.2} parent=1 // pred_check
      _
    $region15: #{simclr_forward.2} parent=1 // pred_check_branch
      %19 = sbr.rel (0) target = $region17
    $region16: #{simclr_forward.2} parent=1 // pred_region
      _
    $region17: #{simclr_forward.2} parent=1 // pred_fallthru
      _
    %v20 = vld [vmem:[%s3] sm:$0xff]
    %v21 = vlaneseq
    %v22 = vand.u32 %v21, 127
    %vm24 = vcmp.lt.s32.totalorder %v22, 36
    %v25 = vsel %vm24, %v20, %v10
    %27 = vst [vmem:[#allocation9] sm:$0xff] %v25
    %s28 = scalar_lea.vmem %s3, 8
    %v29 = vld [vmem:[%s28] sm:$0xff]
    %v30 = vlaneseq
    %v31 = vand.u32 %v30, 127
    %vm33 = vcmp.lt.s32.totalorder %v31, 36
    %v34 = vsel %vm33, %v29, %v10
    %s35 = scalar_lea.vmem [#allocation9], 8
    %37 = vst [vmem:[%s35] sm:$0xff] %v34
    %s38 = scalar_lea.vmem %s3, 16
    %v39 = vld [vmem:[%s38] sm:$0xff]
    %v40 = vlaneseq
    %v41 = vand.u32 %v40, 127
    %vm43 = vcmp.lt.s32.totalorder %v41, 36
    %v44 = vsel %vm43, %v39, %v10
    %s45 = scalar_lea.vmem [#allocation9], 16
    %47 = vst [vmem:[%s45] sm:$0xff] %v44
    %s48 = scalar_lea.vmem %s3, 24
    %v49 = vld [vmem:[%s48] sm:$0xff]
    %v50 = vlaneseq
    %v51 = vand.u32 %v50, 127
    %vm53 = vcmp.lt.s32.totalorder %v51, 36
    %v54 = vsel %vm53, %v49, %v10
    %s55 = scalar_lea.vmem [#allocation9], 24
    %57 = vst [vmem:[%s55] sm:$0xff] %v54
    %s58 = scalar_lea.vmem %s3, 32
    %v59 = vld [vmem:[%s58] sm:$0xff]
    %v60 = vlaneseq
    %v61 = vand.u32 %v60, 127
    %vm63 = vcmp.lt.s32.totalorder %v61, 36
    %v64 = vsel %vm63, %v59, %v10
    %s65 = scalar_lea.vmem [#allocation9], 32
    %67 = vst [vmem:[%s65] sm:$0xff] %v64
    %s68 = scalar_lea.vmem %s3, 40
    %v69 = vld [vmem:[%s68] sm:$0xff]
    %v70 = vlaneseq
    %v71 = vand.u32 %v70, 127
    %vm73 = vcmp.lt.s32.totalorder %v71, 36
    %v74 = vsel %vm73, %v69, %v10
    %s75 = scalar_lea.vmem [#allocation9], 40
    %77 = vst [vmem:[%s75] sm:$0xff] %v74
    %s78 = scalar_lea.vmem %s3, 48
    %v79 = vld [vmem:[%s78] sm:$0xff]
    %v80 = vlaneseq
    %v81 = vand.u32 %v80, 127
    %vm83 = vcmp.lt.s32.totalorder %v81, 36
    %v84 = vsel %vm83, %v79, %v10
    %s85 = scalar_lea.vmem [#allocation9], 48
    %87 = vst [vmem:[%s85] sm:$0xff] %v84
    %s88 = scalar_lea.vmem %s3, 56
    %v89 = vld [vmem:[%s88] sm:$0xff]
    %v90 = vlaneseq
    %v91 = vand.u32 %v90, 127
    %vm93 = vcmp.lt.s32.totalorder %v91, 36
    %v94 = vsel %vm93, %v89, %v10
    %s95 = scalar_lea.vmem [#allocation9], 56
    %97 = vst [vmem:[%s95] sm:$0xff] %v94
    %s98 = scalar_lea.vmem %s3, 64
    %v99 = vld [vmem:[%s98] sm:$0xff]
    %v100 = vlaneseq
    %v101 = vand.u32 %v100, 127
    %vm103 = vcmp.lt.s32.totalorder %v101, 36
    %v104 = vsel %vm103, %v99, %v10
    %s105 = scalar_lea.vmem [#allocation9], 64
    %107 = vst [vmem:[%s105] sm:$0xff] %v104
    %s108 = scalar_lea.vmem %s3, 72
    %v109 = vld [vmem:[%s108] sm:$0xff]
    %v110 = vlaneseq
    %v111 = vand.u32 %v110, 127
    %vm113 = vcmp.lt.s32.totalorder %v111, 36
    %v114 = vsel %vm113, %v109, %v10
    %s115 = scalar_lea.vmem [#allocation9], 72
    %117 = vst [vmem:[%s115] sm:$0xff] %v114
    %s118 = scalar_lea.vmem %s3, 80
    %v119 = vld [vmem:[%s118] sm:$0xff]
    %v120 = vlaneseq
    %v121 = vand.u32 %v120, 127
    %vm123 = vcmp.lt.s32.totalorder %v121, 36
    %v124 = vsel %vm123, %v119, %v10
    %s125 = scalar_lea.vmem [#allocation9], 80
    %127 = vst [vmem:[%s125] sm:$0xff] %v124
    %s128 = scalar_lea.vmem %s3, 88
    %v129 = vld [vmem:[%s128] sm:$0xff]
    %v130 = vlaneseq
    %v131 = vand.u32 %v130, 127
    %vm133 = vcmp.lt.s32.totalorder %v131, 36
    %v134 = vsel %vm133, %v129, %v10
    %s135 = scalar_lea.vmem [#allocation9], 88
    %137 = vst [vmem:[%s135] sm:$0xff] %v134
    %s138 = scalar_lea.vmem %s3, 96
    %v139 = vld [vmem:[%s138] sm:$0xff]
    %v140 = vlaneseq
    %v141 = vand.u32 %v140, 127
    %vm143 = vcmp.lt.s32.totalorder %v141, 36
    %v144 = vsel %vm143, %v139, %v10
    %s145 = scalar_lea.vmem [#allocation9], 96
    %147 = vst [vmem:[%s145] sm:$0xff] %v144
    %s148 = scalar_lea.vmem %s3, 104
    %v149 = vld [vmem:[%s148] sm:$0xff]
    %v150 = vlaneseq
    %v151 = vand.u32 %v150, 127
    %vm153 = vcmp.lt.s32.totalorder %v151, 36
    %v154 = vsel %vm153, %v149, %v10
    %s155 = scalar_lea.vmem [#allocation9], 104
    %157 = vst [vmem:[%s155] sm:$0xff] %v154
    %s158 = scalar_lea.vmem %s3, 112
    %v159 = vld [vmem:[%s158] sm:$0xff]
    %v160 = vlaneseq
    %v161 = vand.u32 %v160, 127
    %vm163 = vcmp.lt.s32.totalorder %v161, 36
    %v164 = vsel %vm163, %v159, %v10
    %s165 = scalar_lea.vmem [#allocation9], 112
    %167 = vst [vmem:[%s165] sm:$0xff] %v164
    %s168 = scalar_lea.vmem %s3, 120
    %v169 = vld [vmem:[%s168] sm:$0xff]
    %v170 = vlaneseq
    %v171 = vand.u32 %v170, 127
    %vm173 = vcmp.lt.s32.totalorder %v171, 36
    %v174 = vsel %vm173, %v169, %v10
    %s175 = scalar_lea.vmem [#allocation9], 120
    %177 = vst [vmem:[%s175] sm:$0xff] %v174
    %s178 = scalar_lea.vmem %s3, 128
    %v179 = vld [vmem:[%s178] sm:$0xff]
    %v180 = vlaneseq
    %v181 = vand.u32 %v180, 127
    %vm183 = vcmp.lt.s32.totalorder %v181, 36
    %v184 = vsel %vm183, %v179, %v10
    %s185 = scalar_lea.vmem [#allocation9], 128
    %187 = vst [vmem:[%s185] sm:$0xff] %v184
    %s188 = scalar_lea.vmem %s3, 136
    %v189 = vld [vmem:[%s188] sm:$0xff]
    %v190 = vlaneseq
    %v191 = vand.u32 %v190, 127
    %vm193 = vcmp.lt.s32.totalorder %v191, 36
    %v194 = vsel %vm193, %v189, %v10
    %s195 = scalar_lea.vmem [#allocation9], 136
    %197 = vst [vmem:[%s195] sm:$0xff] %v194
    %s198 = scalar_lea.vmem %s3, 144
    %v199 = vld [vmem:[%s198] sm:$0xff]
    %v200 = vlaneseq
    %v201 = vand.u32 %v200, 127
    %vm203 = vcmp.lt.s32.totalorder %v201, 36
    %v204 = vsel %vm203, %v199, %v10
    %s205 = scalar_lea.vmem [#allocation9], 144
    %207 = vst [vmem:[%s205] sm:$0xff] %v204
    %s208 = scalar_lea.vmem %s3, 152
    %v209 = vld [vmem:[%s208] sm:$0xff]
    %v210 = vlaneseq
    %v211 = vand.u32 %v210, 127
    %vm213 = vcmp.lt.s32.totalorder %v211, 36
    %v214 = vsel %vm213, %v209, %v10
    %s215 = scalar_lea.vmem [#allocation9], 152
    %217 = vst [vmem:[%s215] sm:$0xff] %v214
    %s218 = scalar_lea.vmem %s3, 160
    %v219 = vld [vmem:[%s218] sm:$0xff]
    %v220 = vlaneseq
    %v221 = vand.u32 %v220, 127
    %vm223 = vcmp.lt.s32.totalorder %v221, 36
    %v224 = vsel %vm223, %v219, %v10
    %s225 = scalar_lea.vmem [#allocation9], 160
    %227 = vst [vmem:[%s225] sm:$0xff] %v224
    %s228 = scalar_lea.vmem %s3, 168
    %v229 = vld [vmem:[%s228] sm:$0xff]
    %v230 = vlaneseq
    %v231 = vand.u32 %v230, 127
    %vm233 = vcmp.lt.s32.totalorder %v231, 36
    %v234 = vsel %vm233, %v229, %v10
    %s235 = scalar_lea.vmem [#allocation9], 168
    %237 = vst [vmem:[%s235] sm:$0xff] %v234
    %s238 = scalar_lea.vmem %s3, 176
    %v239 = vld [vmem:[%s238] sm:$0xff]
    %v240 = vlaneseq
    %v241 = vand.u32 %v240, 127
    %vm243 = vcmp.lt.s32.totalorder %v241, 36
    %v244 = vsel %vm243, %v239, %v10
    %s245 = scalar_lea.vmem [#allocation9], 176
    %247 = vst [vmem:[%s245] sm:$0xff] %v244
    %s248 = scalar_lea.vmem %s3, 184
    %v249 = vld [vmem:[%s248] sm:$0xff]
    %v250 = vlaneseq
    %v251 = vand.u32 %v250, 127
    %vm253 = vcmp.lt.s32.totalorder %v251, 36
    %v254 = vsel %vm253, %v249, %v10
    %s255 = scalar_lea.vmem [#allocation9], 184
    %257 = vst [vmem:[%s255] sm:$0xff] %v254
    %s258 = scalar_lea.vmem %s3, 192
    %v259 = vld [vmem:[%s258] sm:$0xff]
    %v260 = vlaneseq
    %v261 = vand.u32 %v260, 127
    %vm263 = vcmp.lt.s32.totalorder %v261, 36
    %v264 = vsel %vm263, %v259, %v10
    %s265 = scalar_lea.vmem [#allocation9], 192
    %267 = vst [vmem:[%s265] sm:$0xff] %v264
    %s268 = scalar_lea.vmem %s3, 200
    %v269 = vld [vmem:[%s268] sm:$0xff]
    %v270 = vlaneseq
    %v271 = vand.u32 %v270, 127
    %vm273 = vcmp.lt.s32.totalorder %v271, 36
    %v274 = vsel %vm273, %v269, %v10
    %s275 = scalar_lea.vmem [#allocation9], 200
    %277 = vst [vmem:[%s275] sm:$0xff] %v274
    %s278 = scalar_lea.vmem %s3, 208
    %v279 = vld [vmem:[%s278] sm:$0xff]
    %v280 = vlaneseq
    %v281 = vand.u32 %v280, 127
    %vm283 = vcmp.lt.s32.totalorder %v281, 36
    %v284 = vsel %vm283, %v279, %v10
    %s285 = scalar_lea.vmem [#allocation9], 208
    %287 = vst [vmem:[%s285] sm:$0xff] %v284
    %s288 = scalar_lea.vmem %s3, 216
    %v289 = vld [vmem:[%s288] sm:$0xff]
    %v290 = vlaneseq
    %v291 = vand.u32 %v290, 127
    %vm293 = vcmp.lt.s32.totalorder %v291, 36
    %v294 = vsel %vm293, %v289, %v10
    %s295 = scalar_lea.vmem [#allocation9], 216
    %297 = vst [vmem:[%s295] sm:$0xff] %v294
    %s298 = scalar_lea.vmem %s3, 224
    %v299 = vld [vmem:[%s298] sm:$0xff]
    %v300 = vlaneseq
    %v301 = vand.u32 %v300, 127
    %vm303 = vcmp.lt.s32.totalorder %v301, 36
    %v304 = vsel %vm303, %v299, %v10
    %s305 = scalar_lea.vmem [#allocation9], 224
    %307 = vst [vmem:[%s305] sm:$0xff] %v304
    %s308 = scalar_lea.vmem %s3, 232
    %v309 = vld [vmem:[%s308] sm:$0xff]
    %v310 = vlaneseq
    %v311 = vand.u32 %v310, 127
    %vm313 = vcmp.lt.s32.totalorder %v311, 36
    %v314 = vsel %vm313, %v309, %v10
    %s315 = scalar_lea.vmem [#allocation9], 232
    %317 = vst [vmem:[%s315] sm:$0xff] %v314
    %s318 = scalar_lea.vmem %s3, 240
    %v319 = vld [vmem:[%s318] sm:$0xff]
    %v320 = vlaneseq
    %v321 = vand.u32 %v320, 127
    %vm323 = vcmp.lt.s32.totalorder %v321, 36
    %v324 = vsel %vm323, %v319, %v10
    %s325 = scalar_lea.vmem [#allocation9], 240
    %327 = vst [vmem:[%s325] sm:$0xff] %v324
    %s328 = scalar_lea.vmem %s3, 248
    %v329 = vld [vmem:[%s328] sm:$0xff]
    %v330 = vlaneseq
    %v331 = vand.u32 %v330, 127
    %vm333 = vcmp.lt.s32.totalorder %v331, 36
    %v334 = vsel %vm333, %v329, %v10
    %s335 = scalar_lea.vmem [#allocation9], 248
    %337 = vst [vmem:[%s335] sm:$0xff] %v334
    %s338 = scalar_lea.vmem %s3, 256
    %v339 = vld [vmem:[%s338] sm:$0xff]
    %v340 = vlaneseq
    %v341 = vand.u32 %v340, 127
    %vm343 = vcmp.lt.s32.totalorder %v341, 36
    %v344 = vsel %vm343, %v339, %v10
    %s345 = scalar_lea.vmem [#allocation9], 256
    %347 = vst [vmem:[%s345] sm:$0xff] %v344
    %s348 = scalar_lea.vmem %s3, 264
    %v349 = vld [vmem:[%s348] sm:$0xff]
    %v350 = vlaneseq
    %v351 = vand.u32 %v350, 127
    %vm353 = vcmp.lt.s32.totalorder %v351, 36
    %v354 = vsel %vm353, %v349, %v10
    %s355 = scalar_lea.vmem [#allocation9], 264
    %357 = vst [vmem:[%s355] sm:$0xff] %v354
    %s358 = scalar_lea.vmem %s3, 272
    %v359 = vld [vmem:[%s358] sm:$0xff]
    %v360 = vlaneseq
    %v361 = vand.u32 %v360, 127
    %vm363 = vcmp.lt.s32.totalorder %v361, 36
    %v364 = vsel %vm363, %v359, %v10
    %s365 = scalar_lea.vmem [#allocation9], 272
    %367 = vst [vmem:[%s365] sm:$0xff] %v364
    %s368 = scalar_lea.vmem %s3, 280
    %v369 = vld [vmem:[%s368] sm:$0xff]
    %v370 = vlaneseq
    %v371 = vand.u32 %v370, 127
    %vm373 = vcmp.lt.s32.totalorder %v371, 36
    %v374 = vsel %vm373, %v369, %v10
    %s375 = scalar_lea.vmem [#allocation9], 280
    %377 = vst [vmem:[%s375] sm:$0xff] %v374
    %s378 = scalar_lea.vmem %s3, 288
    %v379 = vld [vmem:[%s378] sm:$0xff]
    %v380 = vlaneseq
    %v381 = vand.u32 %v380, 127
    %vm383 = vcmp.lt.s32.totalorder %v381, 36
    %v384 = vsel %vm383, %v379, %v10
    %s385 = scalar_lea.vmem [#allocation9], 288
    %387 = vst [vmem:[%s385] sm:$0xff] %v384
    %s388 = scalar_lea.vmem %s3, 296
    %v389 = vld [vmem:[%s388] sm:$0xff]
    %v390 = vlaneseq
    %v391 = vand.u32 %v390, 127
    %vm393 = vcmp.lt.s32.totalorder %v391, 36
    %v394 = vsel %vm393, %v389, %v10
    %s395 = scalar_lea.vmem [#allocation9], 296
    %397 = vst [vmem:[%s395] sm:$0xff] %v394
    %s398 = scalar_lea.vmem %s3, 304
    %v399 = vld [vmem:[%s398] sm:$0xff]
    %v400 = vlaneseq
    %v401 = vand.u32 %v400, 127
    %vm403 = vcmp.lt.s32.totalorder %v401, 36
    %v404 = vsel %vm403, %v399, %v10
    %s405 = scalar_lea.vmem [#allocation9], 304
    %407 = vst [vmem:[%s405] sm:$0xff] %v404
    %s408 = scalar_lea.vmem %s3, 312
    %v409 = vld [vmem:[%s408] sm:$0xff]
    %v410 = vlaneseq
    %v411 = vand.u32 %v410, 127
    %vm413 = vcmp.lt.s32.totalorder %v411, 36
    %v414 = vsel %vm413, %v409, %v10
    %s415 = scalar_lea.vmem [#allocation9], 312
    %417 = vst [vmem:[%s415] sm:$0xff] %v414
    %s418 = scalar_lea.vmem %s3, 320
    %v419 = vld [vmem:[%s418] sm:$0xff]
    %v420 = vlaneseq
    %v421 = vand.u32 %v420, 127
    %vm423 = vcmp.lt.s32.totalorder %v421, 36
    %v424 = vsel %vm423, %v419, %v10
    %s425 = scalar_lea.vmem [#allocation9], 320
    %427 = vst [vmem:[%s425] sm:$0xff] %v424
    %s428 = scalar_lea.vmem %s3, 328
    %v429 = vld [vmem:[%s428] sm:$0xff]
    %v430 = vlaneseq
    %v431 = vand.u32 %v430, 127
    %vm433 = vcmp.lt.s32.totalorder %v431, 36
    %v434 = vsel %vm433, %v429, %v10
    %s435 = scalar_lea.vmem [#allocation9], 328
    %437 = vst [vmem:[%s435] sm:$0xff] %v434
    %s438 = scalar_lea.vmem %s3, 336
    %v439 = vld [vmem:[%s438] sm:$0xff]
    %v440 = vlaneseq
    %v441 = vand.u32 %v440, 127
    %vm443 = vcmp.lt.s32.totalorder %v441, 36
    %v444 = vsel %vm443, %v439, %v10
    %s445 = scalar_lea.vmem [#allocation9], 336
    %447 = vst [vmem:[%s445] sm:$0xff] %v444
    %s448 = scalar_lea.vmem %s3, 344
    %v449 = vld [vmem:[%s448] sm:$0xff]
    %v450 = vlaneseq
    %v451 = vand.u32 %v450, 127
    %vm453 = vcmp.lt.s32.totalorder %v451, 36
    %v454 = vsel %vm453, %v449, %v10
    %s455 = scalar_lea.vmem [#allocation9], 344
    %457 = vst [vmem:[%s455] sm:$0xff] %v454
    %s458 = scalar_lea.vmem %s3, 352
    %v459 = vld [vmem:[%s458] sm:$0xff]
    %v460 = vlaneseq
    %v461 = vand.u32 %v460, 127
    %vm463 = vcmp.lt.s32.totalorder %v461, 36
    %v464 = vsel %vm463, %v459, %v10
    %s465 = scalar_lea.vmem [#allocation9], 352
    %467 = vst [vmem:[%s465] sm:$0xff] %v464
    %s468 = scalar_lea.vmem %s3, 360
    %v469 = vld [vmem:[%s468] sm:$0xff]
    %v470 = vlaneseq
    %v471 = vand.u32 %v470, 127
    %vm473 = vcmp.lt.s32.totalorder %v471, 36
    %v474 = vsel %vm473, %v469, %v10
    %s475 = scalar_lea.vmem [#allocation9], 360
    %477 = vst [vmem:[%s475] sm:$0xff] %v474
    %s478 = scalar_lea.vmem %s3, 368
    %v479 = vld [vmem:[%s478] sm:$0xff]
    %v480 = vlaneseq
    %v481 = vand.u32 %v480, 127
    %vm483 = vcmp.lt.s32.totalorder %v481, 36
    %v484 = vsel %vm483, %v479, %v10
    %s485 = scalar_lea.vmem [#allocation9], 368
    %487 = vst [vmem:[%s485] sm:$0xff] %v484
    %s488 = scalar_lea.vmem %s3, 376
    %v489 = vld [vmem:[%s488] sm:$0xff]
    %v490 = vlaneseq
    %v491 = vand.u32 %v490, 127
    %vm493 = vcmp.lt.s32.totalorder %v491, 36
    %v494 = vsel %vm493, %v489, %v10
    %s495 = scalar_lea.vmem [#allocation9], 376
    %497 = vst [vmem:[%s495] sm:$0xff] %v494
    %s498 = scalar_lea.vmem %s3, 384
    %v499 = vld [vmem:[%s498] sm:$0xff]
    %v500 = vlaneseq
    %v501 = vand.u32 %v500, 127
    %vm503 = vcmp.lt.s32.totalorder %v501, 36
    %v504 = vsel %vm503, %v499, %v10
    %s505 = scalar_lea.vmem [#allocation9], 384
    %507 = vst [vmem:[%s505] sm:$0xff] %v504
    %s508 = scalar_lea.vmem %s3, 392
    %v509 = vld [vmem:[%s508] sm:$0xff]
    %v510 = vlaneseq
    %v511 = vand.u32 %v510, 127
    %vm513 = vcmp.lt.s32.totalorder %v511, 36
    %v514 = vsel %vm513, %v509, %v10
    %s515 = scalar_lea.vmem [#allocation9], 392
    %517 = vst [vmem:[%s515] sm:$0xff] %v514
    %s518 = scalar_lea.vmem %s3, 400
    %v519 = vld [vmem:[%s518] sm:$0xff]
    %v520 = vlaneseq
    %v521 = vand.u32 %v520, 127
    %vm523 = vcmp.lt.s32.totalorder %v521, 36
    %v524 = vsel %vm523, %v519, %v10
    %s525 = scalar_lea.vmem [#allocation9], 400
    %527 = vst [vmem:[%s525] sm:$0xff] %v524
    %s528 = scalar_lea.vmem %s3, 408
    %v529 = vld [vmem:[%s528] sm:$0xff]
    %v530 = vlaneseq
    %v531 = vand.u32 %v530, 127
    %vm533 = vcmp.lt.s32.totalorder %v531, 36
    %v534 = vsel %vm533, %v529, %v10
    %s535 = scalar_lea.vmem [#allocation9], 408
    %537 = vst [vmem:[%s535] sm:$0xff] %v534
    %s538 = scalar_lea.vmem %s3, 416
    %v539 = vld [vmem:[%s538] sm:$0xff]
    %v540 = vlaneseq
    %v541 = vand.u32 %v540, 127
    %vm543 = vcmp.lt.s32.totalorder %v541, 36
    %v544 = vsel %vm543, %v539, %v10
    %s545 = scalar_lea.vmem [#allocation9], 416
    %547 = vst [vmem:[%s545] sm:$0xff] %v544
    %s548 = scalar_lea.vmem %s3, 424
    %v549 = vld [vmem:[%s548] sm:$0xff]
    %v550 = vlaneseq
    %v551 = vand.u32 %v550, 127
    %vm553 = vcmp.lt.s32.totalorder %v551, 36
    %v554 = vsel %vm553, %v549, %v10
    %s555 = scalar_lea.vmem [#allocation9], 424
    %557 = vst [vmem:[%s555] sm:$0xff] %v554
    %s558 = scalar_lea.vmem %s3, 432
    %v559 = vld [vmem:[%s558] sm:$0xff]
    %v560 = vlaneseq
    %v561 = vand.u32 %v560, 127
    %vm563 = vcmp.lt.s32.totalorder %v561, 36
    %v564 = vsel %vm563, %v559, %v10
    %s565 = scalar_lea.vmem [#allocation9], 432
    %567 = vst [vmem:[%s565] sm:$0xff] %v564
    %s568 = scalar_lea.vmem %s3, 440
    %v569 = vld [vmem:[%s568] sm:$0xff]
    %v570 = vlaneseq
    %v571 = vand.u32 %v570, 127
    %vm573 = vcmp.lt.s32.totalorder %v571, 36
    %v574 = vsel %vm573, %v569, %v10
    %s575 = scalar_lea.vmem [#allocation9], 440
    %577 = vst [vmem:[%s575] sm:$0xff] %v574
    %s578 = scalar_lea.vmem %s3, 448
    %v579 = vld [vmem:[%s578] sm:$0xff]
    %v580 = vlaneseq
    %v581 = vand.u32 %v580, 127
    %vm583 = vcmp.lt.s32.totalorder %v581, 36
    %v584 = vsel %vm583, %v579, %v10
    %s585 = scalar_lea.vmem [#allocation9], 448
    %587 = vst [vmem:[%s585] sm:$0xff] %v584
    %s588 = scalar_lea.vmem %s3, 456
    %v589 = vld [vmem:[%s588] sm:$0xff]
    %v590 = vlaneseq
    %v591 = vand.u32 %v590, 127
    %vm593 = vcmp.lt.s32.totalorder %v591, 36
    %v594 = vsel %vm593, %v589, %v10
    %s595 = scalar_lea.vmem [#allocation9], 456
    %597 = vst [vmem:[%s595] sm:$0xff] %v594
    %s598 = scalar_lea.vmem %s3, 464
    %v599 = vld [vmem:[%s598] sm:$0xff]
    %v600 = vlaneseq
    %v601 = vand.u32 %v600, 127
    %vm603 = vcmp.lt.s32.totalorder %v601, 36
    %v604 = vsel %vm603, %v599, %v10
    %s605 = scalar_lea.vmem [#allocation9], 464
    %607 = vst [vmem:[%s605] sm:$0xff] %v604
    %s608 = scalar_lea.vmem %s3, 472
    %v609 = vld [vmem:[%s608] sm:$0xff]
    %v610 = vlaneseq
    %v611 = vand.u32 %v610, 127
    %vm613 = vcmp.lt.s32.totalorder %v611, 36
    %v614 = vsel %vm613, %v609, %v10
    %s615 = scalar_lea.vmem [#allocation9], 472
    %617 = vst [vmem:[%s615] sm:$0xff] %v614
    %s618 = scalar_lea.vmem %s3, 480
    %v619 = vld [vmem:[%s618] sm:$0xff]
    %v620 = vlaneseq
    %v621 = vand.u32 %v620, 127
    %vm623 = vcmp.lt.s32.totalorder %v621, 36
    %v624 = vsel %vm623, %v619, %v10
    %s625 = scalar_lea.vmem [#allocation9], 480
    %627 = vst [vmem:[%s625] sm:$0xff] %v624
    %s628 = scalar_lea.vmem %s3, 488
    %v629 = vld [vmem:[%s628] sm:$0xff]
    %v630 = vlaneseq
    %v631 = vand.u32 %v630, 127
    %vm633 = vcmp.lt.s32.totalorder %v631, 36
    %v634 = vsel %vm633, %v629, %v10
    %s635 = scalar_lea.vmem [#allocation9], 488
    %637 = vst [vmem:[%s635] sm:$0xff] %v634
    %s638 = scalar_lea.vmem %s3, 496
    %v639 = vld [vmem:[%s638] sm:$0xff]
    %v640 = vlaneseq
    %v641 = vand.u32 %v640, 127
    %vm643 = vcmp.lt.s32.totalorder %v641, 36
    %v644 = vsel %vm643, %v639, %v10
    %s645 = scalar_lea.vmem [#allocation9], 496
    %647 = vst [vmem:[%s645] sm:$0xff] %v644
    %s648 = scalar_lea.vmem %s3, 504
    %v649 = vld [vmem:[%s648] sm:$0xff]
    %v650 = vlaneseq
    %v651 = vand.u32 %v650, 127
    %vm653 = vcmp.lt.s32.totalorder %v651, 36
    %v654 = vsel %vm653, %v649, %v10
    %s655 = scalar_lea.vmem [#allocation9], 504
    %657 = vst [vmem:[%s655] sm:$0xff] %v654
    %v658 = vld [vmem:[#allocation9] sm:$0xff]
    %v659 = vld [vmem:[#allocation9 + $0x8] sm:$0xff]
    %v660 = vld [vmem:[#allocation9 + $0x10] sm:$0xff]
    %v661 = vld [vmem:[#allocation9 + $0x18] sm:$0xff]
    %v662 = vld [vmem:[#allocation9 + $0x20] sm:$0xff]
    %v663 = vld [vmem:[#allocation9 + $0x28] sm:$0xff]
    %v664 = vld [vmem:[#allocation9 + $0x30] sm:$0xff]
    %v665 = vld [vmem:[#allocation9 + $0x38] sm:$0xff]
    %v666 = vld [vmem:[#allocation9 + $0x40] sm:$0xff]
    %v667 = vld [vmem:[#allocation9 + $0x48] sm:$0xff]
    %v668 = vld [vmem:[#allocation9 + $0x50] sm:$0xff]
    %v669 = vld [vmem:[#allocation9 + $0x58] sm:$0xff]
    %v670 = vld [vmem:[#allocation9 + $0x60] sm:$0xff]
    %v671 = vld [vmem:[#allocation9 + $0x68] sm:$0xff]
    %v672 = vld [vmem:[#allocation9 + $0x70] sm:$0xff]
    %v673 = vld [vmem:[#allocation9 + $0x78] sm:$0xff]
    %v674 = vld [vmem:[#allocation9 + $0x80] sm:$0xff]
    %v675 = vld [vmem:[#allocation9 + $0x88] sm:$0xff]
    %v676 = vld [vmem:[#allocation9 + $0x90] sm:$0xff]
    %v677 = vld [vmem:[#allocation9 + $0x98] sm:$0xff]
    %v678 = vld [vmem:[#allocation9 + $0xa0] sm:$0xff]
    %v679 = vld [vmem:[#allocation9 + $0xa8] sm:$0xff]
    %v680 = vld [vmem:[#allocation9 + $0xb0] sm:$0xff]
    %v681 = vld [vmem:[#allocation9 + $0xb8] sm:$0xff]
    %v682 = vld [vmem:[#allocation9 + $0xc0] sm:$0xff]
    %v683 = vld [vmem:[#allocation9 + $0xc8] sm:$0xff]
    %v684 = vld [vmem:[#allocation9 + $0xd0] sm:$0xff]
    %v685 = vld [vmem:[#allocation9 + $0xd8] sm:$0xff]
    %v686 = vld [vmem:[#allocation9 + $0xe0] sm:$0xff]
    %v687 = vld [vmem:[#allocation9 + $0xe8] sm:$0xff]
    %v688 = vld [vmem:[#allocation9 + $0xf0] sm:$0xff]
    %v689 = vld [vmem:[#allocation9 + $0xf8] sm:$0xff]
    %v690 = vld [vmem:[#allocation9 + $0x100] sm:$0xff]
    %v691 = vld [vmem:[#allocation9 + $0x108] sm:$0xff]
    %v692 = vld [vmem:[#allocation9 + $0x110] sm:$0xff]
    %v693 = vld [vmem:[#allocation9 + $0x118] sm:$0xff]
    %v694 = vld [vmem:[#allocation9 + $0x120] sm:$0xff]
    %v695 = vld [vmem:[#allocation9 + $0x128] sm:$0xff]
    %v696 = vld [vmem:[#allocation9 + $0x130] sm:$0xff]
    %v697 = vld [vmem:[#allocation9 + $0x138] sm:$0xff]
    %v698 = vld [vmem:[#allocation9 + $0x140] sm:$0xff]
    %v699 = vld [vmem:[#allocation9 + $0x148] sm:$0xff]
    %v700 = vld [vmem:[#allocation9 + $0x150] sm:$0xff]
    %v701 = vld [vmem:[#allocation9 + $0x158] sm:$0xff]
    %v702 = vld [vmem:[#allocation9 + $0x160] sm:$0xff]
    %v703 = vld [vmem:[#allocation9 + $0x168] sm:$0xff]
    %v704 = vld [vmem:[#allocation9 + $0x170] sm:$0xff]
    %v705 = vld [vmem:[#allocation9 + $0x178] sm:$0xff]
    %v706 = vld [vmem:[#allocation9 + $0x180] sm:$0xff]
    %v707 = vld [vmem:[#allocation9 + $0x188] sm:$0xff]
    %v708 = vld [vmem:[#allocation9 + $0x190] sm:$0xff]
    %v709 = vld [vmem:[#allocation9 + $0x198] sm:$0xff]
    %v710 = vld [vmem:[#allocation9 + $0x1a0] sm:$0xff]
    %v711 = vld [vmem:[#allocation9 + $0x1a8] sm:$0xff]
    %v712 = vld [vmem:[#allocation9 + $0x1b0] sm:$0xff]
    %v713 = vld [vmem:[#allocation9 + $0x1b8] sm:$0xff]
    %v714 = vld [vmem:[#allocation9 + $0x1c0] sm:$0xff]
    %v715 = vld [vmem:[#allocation9 + $0x1c8] sm:$0xff]
    %v716 = vld [vmem:[#allocation9 + $0x1d0] sm:$0xff]
    %v717 = vld [vmem:[#allocation9 + $0x1d8] sm:$0xff]
    %v718 = vld [vmem:[#allocation9 + $0x1e0] sm:$0xff]
    %v719 = vld [vmem:[#allocation9 + $0x1e8] sm:$0xff]
    %v720 = vld [vmem:[#allocation9 + $0x1f0] sm:$0xff]
    %v721 = vld [vmem:[#allocation9 + $0x1f8] sm:$0xff]
    %v722 = vld [vmem:[%s1 + $0x200] sm:$0xff]
    %v723 = vld [vmem:[%s1 + $0x208] sm:$0xff]
    %v724 = vld [vmem:[%s1 + $0x210] sm:$0xff]
    %v725 = vld [vmem:[%s1 + $0x218] sm:$0xff]
    %v726 = vld [vmem:[%s1 + $0x220] sm:$0xff]
    %v727 = vld [vmem:[%s1 + $0x228] sm:$0xff]
    %v728 = vld [vmem:[%s1 + $0x230] sm:$0xff]
    %v729 = vld [vmem:[%s1 + $0x238] sm:$0xff]
    %v730 = vld [vmem:[%s1 + $0x240] sm:$0xff]
    %v731 = vld [vmem:[%s1 + $0x248] sm:$0xff]
    %v732 = vld [vmem:[%s1 + $0x250] sm:$0xff]
    %v733 = vld [vmem:[%s1 + $0x258] sm:$0xff]
    %v734 = vld [vmem:[%s1 + $0x260] sm:$0xff]
    %v735 = vld [vmem:[%s1 + $0x268] sm:$0xff]
    %v736 = vld [vmem:[%s1 + $0x270] sm:$0xff]
    %v737 = vld [vmem:[%s1 + $0x278] sm:$0xff]
    %v738 = vld [vmem:[%s2] sm:$0x1]
    %v740 = vlaneseq
    %v741 = vshrl.u32 %v740, 7
    %v742 = vsub.s32 0, %v741
    %v743 = vrot.slane %v738, %v742
    %745 = vmatprep.subr.mxu0 0.0
    %746 = vmatpush1.msra.mxu0 %v722
    %747 = vmatprep.subr.mxu0 0.0
    %748 = vmatpush1.msra.mxu0 %v723
    %749 = vmatprep.subr.mxu0 0.0
    %750 = vmatpush1.msra.mxu0 %v724
    %751 = vmatprep.subr.mxu0 0.0
    %752 = vmatpush1.msra.mxu0 %v725
    %753 = vmatprep.subr.mxu0 0.0
    %754 = vmatpush1.msra.mxu0 %v726
    %755 = vmatprep.subr.mxu0 0.0
    %756 = vmatpush1.msra.mxu0 %v727
    %757 = vmatprep.subr.mxu0 0.0
    %758 = vmatpush1.msra.mxu0 %v728
    %759 = vmatprep.subr.mxu0 0.0
    %760 = vmatpush1.msra.mxu0 %v729
    %761 = vmatprep.subr.mxu0 0.0
    %762 = vmatpush1.msra.mxu0 %v730
    %763 = vmatprep.subr.mxu0 0.0
    %764 = vmatpush1.msra.mxu0 %v731
    %765 = vmatprep.subr.mxu0 0.0
    %766 = vmatpush1.msra.mxu0 %v732
    %767 = vmatprep.subr.mxu0 0.0
    %768 = vmatpush1.msra.mxu0 %v733
    %769 = vmatprep.subr.mxu0 0.0
    %770 = vmatpush1.msra.mxu0 %v734
    %771 = vmatprep.subr.mxu0 0.0
    %772 = vmatpush1.msra.mxu0 %v735
    %773 = vmatprep.subr.mxu0 0.0
    %774 = vmatpush1.msra.mxu0 %v736
    %775 = vmatprep.subr.mxu0 0.0
    %776 = vmatpush1.msra.mxu0 %v737
    %777 = vmatprep.subr.mxu0 0.0
    %778 = vmatpush1.msra.mxu0 0.0
    %779 = vmatprep.subr.mxu0 0.0
    %780 = vmatpush1.msra.mxu0 0.0
    %781 = vmatprep.subr.mxu0 0.0
    %782 = vmatpush1.msra.mxu0 0.0
    %783 = vmatprep.subr.mxu0 0.0
    %784 = vmatpush1.msra.mxu0 0.0
    %785 = vmatprep.subr.mxu0 0.0
    %786 = vmatpush1.msra.mxu0 0.0
    %787 = vmatprep.subr.mxu0 0.0
    %788 = vmatpush1.msra.mxu0 0.0
    %789 = vmatprep.subr.mxu0 0.0
    %790 = vmatpush1.msra.mxu0 0.0
    %791 = vmatprep.subr.mxu0 0.0
    %792 = vmatpush1.msra.mxu0 0.0
    %793 = vmatprep.subr.mxu0 0.0
    %794 = vmatpush1.msra.mxu0 0.0
    %795 = vmatprep.subr.mxu0 0.0
    %796 = vmatpush1.msra.mxu0 0.0
    %797 = vmatprep.subr.mxu0 0.0
    %798 = vmatpush1.msra.mxu0 0.0
    %799 = vmatprep.subr.mxu0 0.0
    %800 = vmatpush1.msra.mxu0 0.0
    %801 = vmatprep.subr.mxu0 0.0
    %802 = vmatpush1.msra.mxu0 0.0
    %803 = vmatprep.subr.mxu0 0.0
    %804 = vmatpush1.msra.mxu0 0.0
    %805 = vmatprep.subr.mxu0 0.0
    %806 = vmatpush1.msra.mxu0 0.0
    %807 = vmatprep.subr.mxu0 0.0
    %808 = vmatpush1.msra.mxu0 0.0
    %809 = vmatprep.mubr.f32.mxu0 0.0
    %810 = vmatmul.mubr.f32.gmra.mrb[0].mxu0 %v658
    %v811 = vpop.f32.mrb[0].mxu0
    %v812 = vadd.f32 %v743, %v811
    %v813 = vpop.f32.mrb[0].mxu0
    %814 = vmatprep.mubr.f32.mxu0 0.0
    %815 = vmatmul.mubr.f32.gmra.mrb[0].mxu0 %v659
    %v816 = vpop.f32.mrb[0].mxu0
    %v817 = vadd.f32 %v743, %v816
    %v818 = vpop.f32.mrb[0].mxu0
    %819 = vmatprep.mubr.f32.mxu0 0.0
    %820 = vmatmul.mubr.f32.gmra.mrb[0].mxu0 %v660
    %v821 = vpop.f32.mrb[0].mxu0
    %v822 = vadd.f32 %v743, %v821
    %v823 = vpop.f32.mrb[0].mxu0
    %824 = vmatprep.mubr.f32.mxu0 0.0
    %825 = vmatmul.mubr.f32.gmra.mrb[0].mxu0 %v661
    %v826 = vpop.f32.mrb[0].mxu0
    %v827 = vadd.f32 %v743, %v826
    %v828 = vpop.f32.mrb[0].mxu0
    %829 = vmatprep.mubr.f32.mxu0 0.0
    %830 = vmatmul.mubr.f32.gmra.mrb[0].mxu0 %v662
    %v831 = vpop.f32.mrb[0].mxu0
    %v832 = vadd.f32 %v743, %v831
    %v833 = vpop.f32.mrb[0].mxu0
    %834 = vmatprep.mubr.f32.mxu0 0.0
    %835 = vmatmul.mubr.f32.gmra.mrb[0].mxu0 %v663
    %v836 = vpop.f32.mrb[0].mxu0
    %v837 = vadd.f32 %v743, %v836
    %v838 = vpop.f32.mrb[0].mxu0
    %839 = vmatprep.mubr.f32.mxu0 0.0
    %840 = vmatmul.mubr.f32.gmra.mrb[0].mxu0 %v664
    %v841 = vpop.f32.mrb[0].mxu0
    %v842 = vadd.f32 %v743, %v841
    %v843 = vpop.f32.mrb[0].mxu0
    %844 = vmatprep.mubr.f32.mxu0 0.0
    %845 = vmatmul.mubr.f32.gmra.mrb[0].mxu0 %v665
    %v846 = vpop.f32.mrb[0].mxu0
    %v847 = vadd.f32 %v743, %v846
    %v848 = vpop.f32.mrb[0].mxu0
    %849 = vmatprep.mubr.f32.mxu0 0.0
    %850 = vmatmul.mubr.f32.gmra.mrb[0].mxu0 %v666
    %v851 = vpop.f32.mrb[0].mxu0
    %v852 = vadd.f32 %v743, %v851
    %v853 = vpop.f32.mrb[0].mxu0
    %854 = vmatprep.mubr.f32.mxu0 0.0
    %855 = vmatmul.mubr.f32.gmra.mrb[0].mxu0 %v667
    %v856 = vpop.f32.mrb[0].mxu0
    %v857 = vadd.f32 %v743, %v856
    %v858 = vpop.f32.mrb[0].mxu0
    %859 = vmatprep.mubr.f32.mxu0 0.0
    %860 = vmatmul.mubr.f32.gmra.mrb[0].mxu0 %v668
    %v861 = vpop.f32.mrb[0].mxu0
    %v862 = vadd.f32 %v743, %v861
    %v863 = vpop.f32.mrb[0].mxu0
    %864 = vmatprep.mubr.f32.mxu0 0.0
    %865 = vmatmul.mubr.f32.gmra.mrb[0].mxu0 %v669
    %v866 = vpop.f32.mrb[0].mxu0
    %v867 = vadd.f32 %v743, %v866
    %v868 = vpop.f32.mrb[0].mxu0
    %869 = vmatprep.mubr.f32.mxu0 0.0
    %870 = vmatmul.mubr.f32.gmra.mrb[0].mxu0 %v670
    %v871 = vpop.f32.mrb[0].mxu0
    %v872 = vadd.f32 %v743, %v871
    %v873 = vpop.f32.mrb[0].mxu0
    %874 = vmatprep.mubr.f32.mxu0 0.0
    %875 = vmatmul.mubr.f32.gmra.mrb[0].mxu0 %v671
    %v876 = vpop.f32.mrb[0].mxu0
    %v877 = vadd.f32 %v743, %v876
    %v878 = vpop.f32.mrb[0].mxu0
    %879 = vmatprep.mubr.f32.mxu0 0.0
    %880 = vmatmul.mubr.f32.gmra.mrb[0].mxu0 %v672
    %v881 = vpop.f32.mrb[0].mxu0
    %v882 = vadd.f32 %v743, %v881
    %v883 = vpop.f32.mrb[0].mxu0
    %884 = vmatprep.mubr.f32.mxu0 0.0
    %885 = vmatmul.mubr.f32.gmra.mrb[0].mxu0 %v673
    %v886 = vpop.f32.mrb[0].mxu0
    %v887 = vadd.f32 %v743, %v886
    %v888 = vpop.f32.mrb[0].mxu0
    %889 = vmatprep.mubr.f32.mxu0 0.0
    %890 = vmatmul.mubr.f32.gmra.mrb[0].mxu0 %v674
    %v891 = vpop.f32.mrb[0].mxu0
    %v892 = vadd.f32 %v743, %v891
    %v893 = vpop.f32.mrb[0].mxu0
    %894 = vmatprep.mubr.f32.mxu0 0.0
    %895 = vmatmul.mubr.f32.gmra.mrb[0].mxu0 %v675
    %v896 = vpop.f32.mrb[0].mxu0
    %v897 = vadd.f32 %v743, %v896
    %v898 = vpop.f32.mrb[0].mxu0
    %899 = vmatprep.mubr.f32.mxu0 0.0
    %900 = vmatmul.mubr.f32.gmra.mrb[0].mxu0 %v676
    %v901 = vpop.f32.mrb[0].mxu0
    %v902 = vadd.f32 %v743, %v901
    %v903 = vpop.f32.mrb[0].mxu0
    %904 = vmatprep.mubr.f32.mxu0 0.0
    %905 = vmatmul.mubr.f32.gmra.mrb[0].mxu0 %v677
    %v906 = vpop.f32.mrb[0].mxu0
    %v907 = vadd.f32 %v743, %v906
    %v908 = vpop.f32.mrb[0].mxu0
    %909 = vmatprep.mubr.f32.mxu0 0.0
    %910 = vmatmul.mubr.f32.gmra.mrb[0].mxu0 %v678
    %v911 = vpop.f32.mrb[0].mxu0
    %v912 = vadd.f32 %v743, %v911
    %v913 = vpop.f32.mrb[0].mxu0
    %914 = vmatprep.mubr.f32.mxu0 0.0
    %915 = vmatmul.mubr.f32.gmra.mrb[0].mxu0 %v679
    %v916 = vpop.f32.mrb[0].mxu0
    %v917 = vadd.f32 %v743, %v916
    %v918 = vpop.f32.mrb[0].mxu0
    %919 = vmatprep.mubr.f32.mxu0 0.0
    %920 = vmatmul.mubr.f32.gmra.mrb[0].mxu0 %v680
    %v921 = vpop.f32.mrb[0].mxu0
    %v922 = vadd.f32 %v743, %v921
    %v923 = vpop.f32.mrb[0].mxu0
    %924 = vmatprep.mubr.f32.mxu0 0.0
    %925 = vmatmul.mubr.f32.gmra.mrb[0].mxu0 %v681
    %v926 = vpop.f32.mrb[0].mxu0
    %v927 = vadd.f32 %v743, %v926
    %v928 = vpop.f32.mrb[0].mxu0
    %929 = vmatprep.mubr.f32.mxu0 0.0
    %930 = vmatmul.mubr.f32.gmra.mrb[0].mxu0 %v682
    %v931 = vpop.f32.mrb[0].mxu0
    %v932 = vadd.f32 %v743, %v931
    %v933 = vpop.f32.mrb[0].mxu0
    %934 = vmatprep.mubr.f32.mxu0 0.0
    %935 = vmatmul.mubr.f32.gmra.mrb[0].mxu0 %v683
    %v936 = vpop.f32.mrb[0].mxu0
    %v937 = vadd.f32 %v743, %v936
    %v938 = vpop.f32.mrb[0].mxu0
    %939 = vmatprep.mubr.f32.mxu0 0.0
    %940 = vmatmul.mubr.f32.gmra.mrb[0].mxu0 %v684
    %v941 = vpop.f32.mrb[0].mxu0
    %v942 = vadd.f32 %v743, %v941
    %v943 = vpop.f32.mrb[0].mxu0
    %944 = vmatprep.mubr.f32.mxu0 0.0
    %945 = vmatmul.mubr.f32.gmra.mrb[0].mxu0 %v685
    %v946 = vpop.f32.mrb[0].mxu0
    %v947 = vadd.f32 %v743, %v946
    %v948 = vpop.f32.mrb[0].mxu0
    %949 = vmatprep.mubr.f32.mxu0 0.0
    %950 = vmatmul.mubr.f32.gmra.mrb[0].mxu0 %v686
    %v951 = vpop.f32.mrb[0].mxu0
    %v952 = vadd.f32 %v743, %v951
    %v953 = vpop.f32.mrb[0].mxu0
    %954 = vmatprep.mubr.f32.mxu0 0.0
    %955 = vmatmul.mubr.f32.gmra.mrb[0].mxu0 %v687
    %v956 = vpop.f32.mrb[0].mxu0
    %v957 = vadd.f32 %v743, %v956
    %v958 = vpop.f32.mrb[0].mxu0
    %959 = vmatprep.mubr.f32.mxu0 0.0
    %960 = vmatmul.mubr.f32.gmra.mrb[0].mxu0 %v688
    %v961 = vpop.f32.mrb[0].mxu0
    %v962 = vadd.f32 %v743, %v961
    %v963 = vpop.f32.mrb[0].mxu0
    %964 = vmatprep.mubr.f32.mxu0 0.0
    %965 = vmatmul.mubr.f32.gmra.mrb[0].mxu0 %v689
    %v966 = vpop.f32.mrb[0].mxu0
    %v967 = vadd.f32 %v743, %v966
    %v968 = vpop.f32.mrb[0].mxu0
    %969 = vmatprep.mubr.f32.mxu0 0.0
    %970 = vmatmul.mubr.f32.gmra.mrb[0].mxu0 %v690
    %v971 = vpop.f32.mrb[0].mxu0
    %v972 = vadd.f32 %v743, %v971
    %v973 = vpop.f32.mrb[0].mxu0
    %974 = vmatprep.mubr.f32.mxu0 0.0
    %975 = vmatmul.mubr.f32.gmra.mrb[0].mxu0 %v691
    %v976 = vpop.f32.mrb[0].mxu0
    %v977 = vadd.f32 %v743, %v976
    %v978 = vpop.f32.mrb[0].mxu0
    %979 = vmatprep.mubr.f32.mxu0 0.0
    %980 = vmatmul.mubr.f32.gmra.mrb[0].mxu0 %v692
    %v981 = vpop.f32.mrb[0].mxu0
    %v982 = vadd.f32 %v743, %v981
    %v983 = vpop.f32.mrb[0].mxu0
    %984 = vmatprep.mubr.f32.mxu0 0.0
    %985 = vmatmul.mubr.f32.gmra.mrb[0].mxu0 %v693
    %v986 = vpop.f32.mrb[0].mxu0
    %v987 = vadd.f32 %v743, %v986
    %v988 = vpop.f32.mrb[0].mxu0
    %989 = vmatprep.mubr.f32.mxu0 0.0
    %990 = vmatmul.mubr.f32.gmra.mrb[0].mxu0 %v694
    %v991 = vpop.f32.mrb[0].mxu0
    %v992 = vadd.f32 %v743, %v991
    %v993 = vpop.f32.mrb[0].mxu0
    %994 = vmatprep.mubr.f32.mxu0 0.0
    %995 = vmatmul.mubr.f32.gmra.mrb[0].mxu0 %v695
    %v996 = vpop.f32.mrb[0].mxu0
    %v997 = vadd.f32 %v743, %v996
    %v998 = vpop.f32.mrb[0].mxu0
    %999 = vmatprep.mubr.f32.mxu0 0.0
    %1000 = vmatmul.mubr.f32.gmra.mrb[0].mxu0 %v696
    %v1001 = vpop.f32.mrb[0].mxu0
    %v1002 = vadd.f32 %v743, %v1001
    %v1003 = vpop.f32.mrb[0].mxu0
    %1004 = vmatprep.mubr.f32.mxu0 0.0
    %1005 = vmatmul.mubr.f32.gmra.mrb[0].mxu0 %v697
    %v1006 = vpop.f32.mrb[0].mxu0
    %v1007 = vadd.f32 %v743, %v1006
    %v1008 = vpop.f32.mrb[0].mxu0
    %1009 = vmatprep.mubr.f32.mxu0 0.0
    %1010 = vmatmul.mubr.f32.gmra.mrb[0].mxu0 %v698
    %v1011 = vpop.f32.mrb[0].mxu0
    %v1012 = vadd.f32 %v743, %v1011
    %v1013 = vpop.f32.mrb[0].mxu0
    %1014 = vmatprep.mubr.f32.mxu0 0.0
    %1015 = vmatmul.mubr.f32.gmra.mrb[0].mxu0 %v699
    %v1016 = vpop.f32.mrb[0].mxu0
    %v1017 = vadd.f32 %v743, %v1016
    %v1018 = vpop.f32.mrb[0].mxu0
    %1019 = vmatprep.mubr.f32.mxu0 0.0
    %1020 = vmatmul.mubr.f32.gmra.mrb[0].mxu0 %v700
    %v1021 = vpop.f32.mrb[0].mxu0
    %v1022 = vadd.f32 %v743, %v1021
    %v1023 = vpop.f32.mrb[0].mxu0
    %1024 = vmatprep.mubr.f32.mxu0 0.0
    %1025 = vmatmul.mubr.f32.gmra.mrb[0].mxu0 %v701
    %v1026 = vpop.f32.mrb[0].mxu0
    %v1027 = vadd.f32 %v743, %v1026
    %v1028 = vpop.f32.mrb[0].mxu0
    %1029 = vmatprep.mubr.f32.mxu0 0.0
    %1030 = vmatmul.mubr.f32.gmra.mrb[0].mxu0 %v702
    %v1031 = vpop.f32.mrb[0].mxu0
    %v1032 = vadd.f32 %v743, %v1031
    %v1033 = vpop.f32.mrb[0].mxu0
    %1034 = vmatprep.mubr.f32.mxu0 0.0
    %1035 = vmatmul.mubr.f32.gmra.mrb[0].mxu0 %v703
    %v1036 = vpop.f32.mrb[0].mxu0
    %v1037 = vadd.f32 %v743, %v1036
    %v1038 = vpop.f32.mrb[0].mxu0
    %1039 = vmatprep.mubr.f32.mxu0 0.0
    %1040 = vmatmul.mubr.f32.gmra.mrb[0].mxu0 %v704
    %v1041 = vpop.f32.mrb[0].mxu0
    %v1042 = vadd.f32 %v743, %v1041
    %v1043 = vpop.f32.mrb[0].mxu0
    %1044 = vmatprep.mubr.f32.mxu0 0.0
    %1045 = vmatmul.mubr.f32.gmra.mrb[0].mxu0 %v705
    %v1046 = vpop.f32.mrb[0].mxu0
    %v1047 = vadd.f32 %v743, %v1046
    %v1048 = vpop.f32.mrb[0].mxu0
    %1049 = vmatprep.mubr.f32.mxu0 0.0
    %1050 = vmatmul.mubr.f32.gmra.mrb[0].mxu0 %v706
    %v1051 = vpop.f32.mrb[0].mxu0
    %v1052 = vadd.f32 %v743, %v1051
    %v1053 = vpop.f32.mrb[0].mxu0
    %1054 = vmatprep.mubr.f32.mxu0 0.0
    %1055 = vmatmul.mubr.f32.gmra.mrb[0].mxu0 %v707
    %v1056 = vpop.f32.mrb[0].mxu0
    %v1057 = vadd.f32 %v743, %v1056
    %v1058 = vpop.f32.mrb[0].mxu0
    %1059 = vmatprep.mubr.f32.mxu0 0.0
    %1060 = vmatmul.mubr.f32.gmra.mrb[0].mxu0 %v708
    %v1061 = vpop.f32.mrb[0].mxu0
    %v1062 = vadd.f32 %v743, %v1061
    %v1063 = vpop.f32.mrb[0].mxu0
    %1064 = vmatprep.mubr.f32.mxu0 0.0
    %1065 = vmatmul.mubr.f32.gmra.mrb[0].mxu0 %v709
    %v1066 = vpop.f32.mrb[0].mxu0
    %v1067 = vadd.f32 %v743, %v1066
    %v1068 = vpop.f32.mrb[0].mxu0
    %1069 = vmatprep.mubr.f32.mxu0 0.0
    %1070 = vmatmul.mubr.f32.gmra.mrb[0].mxu0 %v710
    %v1071 = vpop.f32.mrb[0].mxu0
    %v1072 = vadd.f32 %v743, %v1071
    %v1073 = vpop.f32.mrb[0].mxu0
    %1074 = vmatprep.mubr.f32.mxu0 0.0
    %1075 = vmatmul.mubr.f32.gmra.mrb[0].mxu0 %v711
    %v1076 = vpop.f32.mrb[0].mxu0
    %v1077 = vadd.f32 %v743, %v1076
    %v1078 = vpop.f32.mrb[0].mxu0
    %1079 = vmatprep.mubr.f32.mxu0 0.0
    %1080 = vmatmul.mubr.f32.gmra.mrb[0].mxu0 %v712
    %v1081 = vpop.f32.mrb[0].mxu0
    %v1082 = vadd.f32 %v743, %v1081
    %v1083 = vpop.f32.mrb[0].mxu0
    %1084 = vmatprep.mubr.f32.mxu0 0.0
    %1085 = vmatmul.mubr.f32.gmra.mrb[0].mxu0 %v713
    %v1086 = vpop.f32.mrb[0].mxu0
    %v1087 = vadd.f32 %v743, %v1086
    %v1088 = vpop.f32.mrb[0].mxu0
    %1089 = vmatprep.mubr.f32.mxu0 0.0
    %1090 = vmatmul.mubr.f32.gmra.mrb[0].mxu0 %v714
    %v1091 = vpop.f32.mrb[0].mxu0
    %v1092 = vadd.f32 %v743, %v1091
    %v1093 = vpop.f32.mrb[0].mxu0
    %1094 = vmatprep.mubr.f32.mxu0 0.0
    %1095 = vmatmul.mubr.f32.gmra.mrb[0].mxu0 %v715
    %v1096 = vpop.f32.mrb[0].mxu0
    %v1097 = vadd.f32 %v743, %v1096
    %v1098 = vpop.f32.mrb[0].mxu0
    %1099 = vmatprep.mubr.f32.mxu0 0.0
    %1100 = vmatmul.mubr.f32.gmra.mrb[0].mxu0 %v716
    %v1101 = vpop.f32.mrb[0].mxu0
    %v1102 = vadd.f32 %v743, %v1101
    %v1103 = vpop.f32.mrb[0].mxu0
    %1104 = vmatprep.mubr.f32.mxu0 0.0
    %1105 = vmatmul.mubr.f32.gmra.mrb[0].mxu0 %v717
    %v1106 = vpop.f32.mrb[0].mxu0
    %v1107 = vadd.f32 %v743, %v1106
    %v1108 = vpop.f32.mrb[0].mxu0
    %1109 = vmatprep.mubr.f32.mxu0 0.0
    %1110 = vmatmul.mubr.f32.gmra.mrb[0].mxu0 %v718
    %v1111 = vpop.f32.mrb[0].mxu0
    %v1112 = vadd.f32 %v743, %v1111
    %v1113 = vpop.f32.mrb[0].mxu0
    %1114 = vmatprep.mubr.f32.mxu0 0.0
    %1115 = vmatmul.mubr.f32.gmra.mrb[0].mxu0 %v719
    %v1116 = vpop.f32.mrb[0].mxu0
    %v1117 = vadd.f32 %v743, %v1116
    %v1118 = vpop.f32.mrb[0].mxu0
    %1119 = vmatprep.mubr.f32.mxu0 0.0
    %1120 = vmatmul.mubr.f32.gmra.mrb[0].mxu0 %v720
    %v1121 = vpop.f32.mrb[0].mxu0
    %v1122 = vadd.f32 %v743, %v1121
    %v1123 = vpop.f32.mrb[0].mxu0
    %1124 = vmatprep.mubr.f32.mxu0 0.0
    %1125 = vmatmul.mubr.f32.gmra.mrb[0].mxu0 %v721
    %v1126 = vpop.f32.mrb[0].mxu0
    %v1127 = vadd.f32 %v743, %v1126
    %v1128 = vpop.f32.mrb[0].mxu0
    %1129 = vdwg.mxu0
    %v1130 = vmax.f32 %v812, 0.0
    %v1131 = vmax.f32 %v817, 0.0
    %v1132 = vmax.f32 %v822, 0.0
    %v1133 = vmax.f32 %v827, 0.0
    %v1134 = vmax.f32 %v832, 0.0
    %v1135 = vmax.f32 %v837, 0.0
    %v1136 = vmax.f32 %v842, 0.0
    %v1137 = vmax.f32 %v847, 0.0
    %v1138 = vmax.f32 %v852, 0.0
    %v1139 = vmax.f32 %v857, 0.0
    %v1140 = vmax.f32 %v862, 0.0
    %v1141 = vmax.f32 %v867, 0.0
    %v1142 = vmax.f32 %v872, 0.0
    %v1143 = vmax.f32 %v877, 0.0
    %v1144 = vmax.f32 %v882, 0.0
    %v1145 = vmax.f32 %v887, 0.0
    %v1146 = vmax.f32 %v892, 0.0
    %v1147 = vmax.f32 %v897, 0.0
    %v1148 = vmax.f32 %v902, 0.0
    %v1149 = vmax.f32 %v907, 0.0
    %v1150 = vmax.f32 %v912, 0.0
    %v1151 = vmax.f32 %v917, 0.0
    %v1152 = vmax.f32 %v922, 0.0
    %v1153 = vmax.f32 %v927, 0.0
    %v1154 = vmax.f32 %v932, 0.0
    %v1155 = vmax.f32 %v937, 0.0
    %v1156 = vmax.f32 %v942, 0.0
    %v1157 = vmax.f32 %v947, 0.0
    %v1158 = vmax.f32 %v952, 0.0
    %v1159 = vmax.f32 %v957, 0.0
    %v1160 = vmax.f32 %v962, 0.0
    %v1161 = vmax.f32 %v967, 0.0
    %v1162 = vmax.f32 %v972, 0.0
    %v1163 = vmax.f32 %v977, 0.0
    %v1164 = vmax.f32 %v982, 0.0
    %v1165 = vmax.f32 %v987, 0.0
    %v1166 = vmax.f32 %v992, 0.0
    %v1167 = vmax.f32 %v997, 0.0
    %v1168 = vmax.f32 %v1002, 0.0
    %v1169 = vmax.f32 %v1007, 0.0
    %v1170 = vmax.f32 %v1012, 0.0
    %v1171 = vmax.f32 %v1017, 0.0
    %v1172 = vmax.f32 %v1022, 0.0
    %v1173 = vmax.f32 %v1027, 0.0
    %v1174 = vmax.f32 %v1032, 0.0
    %v1175 = vmax.f32 %v1037, 0.0
    %v1176 = vmax.f32 %v1042, 0.0
    %v1177 = vmax.f32 %v1047, 0.0
    %v1178 = vmax.f32 %v1052, 0.0
    %v1179 = vmax.f32 %v1057, 0.0
    %v1180 = vmax.f32 %v1062, 0.0
    %v1181 = vmax.f32 %v1067, 0.0
    %v1182 = vmax.f32 %v1072, 0.0
    %v1183 = vmax.f32 %v1077, 0.0
    %v1184 = vmax.f32 %v1082, 0.0
    %v1185 = vmax.f32 %v1087, 0.0
    %v1186 = vmax.f32 %v1092, 0.0
    %v1187 = vmax.f32 %v1097, 0.0
    %v1188 = vmax.f32 %v1102, 0.0
    %v1189 = vmax.f32 %v1107, 0.0
    %v1190 = vmax.f32 %v1112, 0.0
    %v1191 = vmax.f32 %v1117, 0.0
    %v1192 = vmax.f32 %v1122, 0.0
    %v1193 = vmax.f32 %v1127, 0.0
    %v1194 = vadd.f32 %v1130, %v1131
    %v1195 = vadd.f32 %v1194, %v1132
    %v1196 = vadd.f32 %v1195, %v1133
    %v1197 = vadd.f32 %v1196, %v1134
    %v1198 = vadd.f32 %v1197, %v1135
    %v1199 = vadd.f32 %v1198, %v1136
    %v1200 = vadd.f32 %v1199, %v1137
    %v1201 = vadd.f32 %v1200, %v1138
    %v1202 = vadd.f32 %v1201, %v1139
    %v1203 = vadd.f32 %v1202, %v1140
    %v1204 = vadd.f32 %v1203, %v1141
    %v1205 = vadd.f32 %v1204, %v1142
    %v1206 = vadd.f32 %v1205, %v1143
    %v1207 = vadd.f32 %v1206, %v1144
    %v1208 = vadd.f32 %v1207, %v1145
    %v1209 = vadd.f32 %v1208, %v1146
    %v1210 = vadd.f32 %v1209, %v1147
    %v1211 = vadd.f32 %v1210, %v1148
    %v1212 = vadd.f32 %v1211, %v1149
    %v1213 = vadd.f32 %v1212, %v1150
    %v1214 = vadd.f32 %v1213, %v1151
    %v1215 = vadd.f32 %v1214, %v1152
    %v1216 = vadd.f32 %v1215, %v1153
    %v1217 = vadd.f32 %v1216, %v1154
    %v1218 = vadd.f32 %v1217, %v1155
    %v1219 = vadd.f32 %v1218, %v1156
    %v1220 = vadd.f32 %v1219, %v1157
    %v1221 = vadd.f32 %v1220, %v1158
    %v1222 = vadd.f32 %v1221, %v1159
    %v1223 = vadd.f32 %v1222, %v1160
    %v1224 = vadd.f32 %v1223, %v1161
    %v1225 = vrot.slane %v1224, 4
    %v1226 = vadd.f32 %v1224, %v1225
    %v1227 = vrot.slane %v1226, 2
    %v1228 = vadd.f32 %v1226, %v1227
    %v1229 = vrot.slane %v1228, 1
    %v1230 = vadd.f32 %v1228, %v1229
    %v1231 = vadd.f32 %v1162, %v1163
    %v1232 = vadd.f32 %v1231, %v1164
    %v1233 = vadd.f32 %v1232, %v1165
    %v1234 = vadd.f32 %v1233, %v1166
    %v1235 = vadd.f32 %v1234, %v1167
    %v1236 = vadd.f32 %v1235, %v1168
    %v1237 = vadd.f32 %v1236, %v1169
    %v1238 = vadd.f32 %v1237, %v1170
    %v1239 = vadd.f32 %v1238, %v1171
    %v1240 = vadd.f32 %v1239, %v1172
    %v1241 = vadd.f32 %v1240, %v1173
    %v1242 = vadd.f32 %v1241, %v1174
    %v1243 = vadd.f32 %v1242, %v1175
    %v1244 = vadd.f32 %v1243, %v1176
    %v1245 = vadd.f32 %v1244, %v1177
    %v1246 = vadd.f32 %v1245, %v1178
    %v1247 = vadd.f32 %v1246, %v1179
    %v1248 = vadd.f32 %v1247, %v1180
    %v1249 = vadd.f32 %v1248, %v1181
    %v1250 = vadd.f32 %v1249, %v1182
    %v1251 = vadd.f32 %v1250, %v1183
    %v1252 = vadd.f32 %v1251, %v1184
    %v1253 = vadd.f32 %v1252, %v1185
    %v1254 = vadd.f32 %v1253, %v1186
    %v1255 = vadd.f32 %v1254, %v1187
    %v1256 = vadd.f32 %v1255, %v1188
    %v1257 = vadd.f32 %v1256, %v1189
    %v1258 = vadd.f32 %v1257, %v1190
    %v1259 = vadd.f32 %v1258, %v1191
    %v1260 = vadd.f32 %v1259, %v1192
    %v1261 = vadd.f32 %v1260, %v1193
    %v1262 = vrot.slane %v1261, 4
    %v1263 = vadd.f32 %v1261, %v1262
    %v1264 = vrot.slane %v1263, 2
    %v1265 = vadd.f32 %v1263, %v1264
    %v1266 = vrot.slane %v1265, 1
    %v1267 = vadd.f32 %v1265, %v1266
    %vm1268 = vcmask 1040384
    %v1269 = vsel %vm1268, %v1230, %v1267
    %v1270 = vmul.f32 %v1269, 0.00390625
    %v1271 = vld [vmem:[%s0] sm:$0xff]
    %v1272 = vld [vmem:[%s0 + $0x8] sm:$0xff]
    %v1273 = vld [vmem:[%s0 + $0x10] sm:$0xff]
    %v1274 = vld [vmem:[%s0 + $0x18] sm:$0xff]
    %v1275 = vld [vmem:[%s0 + $0x20] sm:$0xff]
    %v1276 = vld [vmem:[%s0 + $0x28] sm:$0xff]
    %v1277 = vld [vmem:[%s0 + $0x30] sm:$0xff]
    %v1278 = vld [vmem:[%s0 + $0x38] sm:$0xff]
    %v1279 = vld [vmem:[%s0 + $0x40] sm:$0xff]
    %v1280 = vld [vmem:[%s0 + $0x48] sm:$0xff]
    %v1281 = vld [vmem:[%s0 + $0x50] sm:$0xff]
    %v1282 = vld [vmem:[%s0 + $0x58] sm:$0xff]
    %v1283 = vld [vmem:[%s0 + $0x60] sm:$0xff]
    %v1284 = vld [vmem:[%s0 + $0x68] sm:$0xff]
    %v1285 = vld [vmem:[%s0 + $0x70] sm:$0xff]
    %v1286 = vld [vmem:[%s0 + $0x78] sm:$0xff]
    %v1287 = vld [vmem:[%s0 + $0x80] sm:$0xff]
    %v1288 = vld [vmem:[%s0 + $0x88] sm:$0xff]
    %v1289 = vld [vmem:[%s0 + $0x90] sm:$0xff]
    %v1290 = vld [vmem:[%s0 + $0x98] sm:$0xff]
    %v1291 = vld [vmem:[%s0 + $0xa0] sm:$0xff]
    %v1292 = vld [vmem:[%s0 + $0xa8] sm:$0xff]
    %v1293 = vld [vmem:[%s0 + $0xb0] sm:$0xff]
    %v1294 = vld [vmem:[%s0 + $0xb8] sm:$0xff]
    %v1295 = vld [vmem:[%s0 + $0xc0] sm:$0xff]
    %v1296 = vld [vmem:[%s0 + $0xc8] sm:$0xff]
    %v1297 = vld [vmem:[%s0 + $0xd0] sm:$0xff]
    %v1298 = vld [vmem:[%s0 + $0xd8] sm:$0xff]
    %v1299 = vld [vmem:[%s0 + $0xe0] sm:$0xff]
    %v1300 = vld [vmem:[%s0 + $0xe8] sm:$0xff]
    %v1301 = vld [vmem:[%s0 + $0xf0] sm:$0xff]
    %v1302 = vld [vmem:[%s0 + $0xf8] sm:$0xff]
    %v1303 = vld [vmem:[%s0 + $0x100] sm:$0xff]
    %v1304 = vld [vmem:[%s0 + $0x108] sm:$0xff]
    %v1305 = vld [vmem:[%s0 + $0x110] sm:$0xff]
    %v1306 = vld [vmem:[%s0 + $0x118] sm:$0xff]
    %v1307 = vld [vmem:[%s0 + $0x120] sm:$0xff]
    %v1308 = vld [vmem:[%s0 + $0x128] sm:$0xff]
    %v1309 = vld [vmem:[%s0 + $0x130] sm:$0xff]
    %v1310 = vld [vmem:[%s0 + $0x138] sm:$0xff]
    %v1311 = vld [vmem:[%s0 + $0x140] sm:$0xff]
    %v1312 = vld [vmem:[%s0 + $0x148] sm:$0xff]
    %v1313 = vld [vmem:[%s0 + $0x150] sm:$0xff]
    %v1314 = vld [vmem:[%s0 + $0x158] sm:$0xff]
    %v1315 = vld [vmem:[%s0 + $0x160] sm:$0xff]
    %v1316 = vld [vmem:[%s0 + $0x168] sm:$0xff]
    %v1317 = vld [vmem:[%s0 + $0x170] sm:$0xff]
    %v1318 = vld [vmem:[%s0 + $0x178] sm:$0xff]
    %v1319 = vld [vmem:[%s0 + $0x180] sm:$0xff]
    %v1320 = vld [vmem:[%s0 + $0x188] sm:$0xff]
    %v1321 = vld [vmem:[%s0 + $0x190] sm:$0xff]
    %v1322 = vld [vmem:[%s0 + $0x198] sm:$0xff]
    %v1323 = vld [vmem:[%s0 + $0x1a0] sm:$0xff]
    %v1324 = vld [vmem:[%s0 + $0x1a8] sm:$0xff]
    %v1325 = vld [vmem:[%s0 + $0x1b0] sm:$0xff]
    %v1326 = vld [vmem:[%s0 + $0x1b8] sm:$0xff]
    %v1327 = vld [vmem:[%s0 + $0x1c0] sm:$0xff]
    %v1328 = vld [vmem:[%s0 + $0x1c8] sm:$0xff]
    %v1329 = vld [vmem:[%s0 + $0x1d0] sm:$0xff]
    %v1330 = vld [vmem:[%s0 + $0x1d8] sm:$0xff]
    %v1331 = vld [vmem:[%s0 + $0x1e0] sm:$0xff]
    %v1332 = vld [vmem:[%s0 + $0x1e8] sm:$0xff]
    %v1333 = vld [vmem:[%s0 + $0x1f0] sm:$0xff]
    %v1334 = vld [vmem:[%s0 + $0x1f8] sm:$0xff]
    %v1335 = vld [vmem:[%s2 + $0x1] sm:$0xf]
    %v1337 = vlaneseq
    %v1338 = vshrl.u32 %v1337, 7
    %v1339 = vsub.s32 0, %v1338
    %v1340 = vrot.slane %v1335, %v1339
    %v1341 = vlaneseq
    %v1342 = vshrl.u32 %v1341, 7
    %v1343 = vsub.s32 1, %v1342
    %v1344 = vrot.slane %v1335, %v1343
    %v1345 = vlaneseq
    %v1346 = vshrl.u32 %v1345, 7
    %v1347 = vsub.s32 2, %v1346
    %v1348 = vrot.slane %v1335, %v1347
    %v1349 = vlaneseq
    %v1350 = vshrl.u32 %v1349, 7
    %v1351 = vsub.s32 3, %v1350
    %v1352 = vrot.slane %v1335, %v1351
    %1357 = vmatprep.subr.mxu0 %v1272
    %1358 = vmatpush1.msra.mxu0 %v1271
    %1359 = vmatprep.subr.mxu0 %v1276
    %1360 = vmatpush1.msra.mxu0 %v1275
    %1361 = vmatprep.subr.mxu0 %v1280
    %1362 = vmatpush1.msra.mxu0 %v1279
    %1363 = vmatprep.subr.mxu0 %v1284
    %1364 = vmatpush1.msra.mxu0 %v1283
    %1365 = vmatprep.subr.mxu0 %v1288
    %1366 = vmatpush1.msra.mxu0 %v1287
    %1367 = vmatprep.subr.mxu0 %v1292
    %1368 = vmatpush1.msra.mxu0 %v1291
    %1369 = vmatprep.subr.mxu0 %v1296
    %1370 = vmatpush1.msra.mxu0 %v1295
    %1371 = vmatprep.subr.mxu0 %v1300
    %1372 = vmatpush1.msra.mxu0 %v1299
    %1373 = vmatprep.subr.mxu0 %v1304
    %1374 = vmatpush1.msra.mxu0 %v1303
    %1375 = vmatprep.subr.mxu0 %v1308
    %1376 = vmatpush1.msra.mxu0 %v1307
    %1377 = vmatprep.subr.mxu0 %v1312
    %1378 = vmatpush1.msra.mxu0 %v1311
    %1379 = vmatprep.subr.mxu0 %v1316
    %1380 = vmatpush1.msra.mxu0 %v1315
    %1381 = vmatprep.subr.mxu0 %v1320
    %1382 = vmatpush1.msra.mxu0 %v1319
    %1383 = vmatprep.subr.mxu0 %v1324
    %1384 = vmatpush1.msra.mxu0 %v1323
    %1385 = vmatprep.subr.mxu0 %v1328
    %1386 = vmatpush1.msra.mxu0 %v1327
    %1387 = vmatprep.subr.mxu0 %v1332
    %1388 = vmatpush1.msra.mxu0 %v1331
    %1389 = vmatprep.subr.mxu0 0.0
    %1390 = vmatpush1.msra.mxu0 0.0
    %1391 = vmatprep.subr.mxu0 0.0
    %1392 = vmatpush1.msra.mxu0 0.0
    %1393 = vmatprep.subr.mxu0 0.0
    %1394 = vmatpush1.msra.mxu0 0.0
    %1395 = vmatprep.subr.mxu0 0.0
    %1396 = vmatpush1.msra.mxu0 0.0
    %1397 = vmatprep.subr.mxu0 0.0
    %1398 = vmatpush1.msra.mxu0 0.0
    %1399 = vmatprep.subr.mxu0 0.0
    %1400 = vmatpush1.msra.mxu0 0.0
    %1401 = vmatprep.subr.mxu0 0.0
    %1402 = vmatpush1.msra.mxu0 0.0
    %1403 = vmatprep.subr.mxu0 0.0
    %1404 = vmatpush1.msra.mxu0 0.0
    %1405 = vmatprep.subr.mxu0 0.0
    %1406 = vmatpush1.msra.mxu0 0.0
    %1407 = vmatprep.subr.mxu0 0.0
    %1408 = vmatpush1.msra.mxu0 0.0
    %1409 = vmatprep.subr.mxu0 0.0
    %1410 = vmatpush1.msra.mxu0 0.0
    %1411 = vmatprep.subr.mxu0 0.0
    %1412 = vmatpush1.msra.mxu0 0.0
    %1413 = vmatprep.subr.mxu0 0.0
    %1414 = vmatpush1.msra.mxu0 0.0
    %1415 = vmatprep.subr.mxu0 0.0
    %1416 = vmatpush1.msra.mxu0 0.0
    %1417 = vmatprep.subr.mxu0 0.0
    %1418 = vmatpush1.msra.mxu0 0.0
    %1419 = vmatprep.subr.mxu0 0.0
    %1420 = vmatpush1.msra.mxu0 0.0
    %1421 = vmatprep.mubr.f32.mxu0 0.0
    %1422 = vmatmul.mubr.f32.gmra.mrb[0].mxu0 %v1270
    %v1423 = vpop.f32.mrb[0].mxu0
    %v1424 = vadd.f32 %v1340, %v1423
    %v1425 = vpop.f32.mrb[0].mxu0
    %v1426 = vadd.f32 %v1344, %v1425
    %1427 = vdwg.mxu0
    %1428 = vmatprep.subr.mxu0 %v1274
    %1429 = vmatpush1.msra.mxu0 %v1273
    %1430 = vmatprep.subr.mxu0 %v1278
    %1431 = vmatpush1.msra.mxu0 %v1277
    %1432 = vmatprep.subr.mxu0 %v1282
    %1433 = vmatpush1.msra.mxu0 %v1281
    %1434 = vmatprep.subr.mxu0 %v1286
    %1435 = vmatpush1.msra.mxu0 %v1285
    %1436 = vmatprep.subr.mxu0 %v1290
    %1437 = vmatpush1.msra.mxu0 %v1289
    %1438 = vmatprep.subr.mxu0 %v1294
    %1439 = vmatpush1.msra.mxu0 %v1293
    %1440 = vmatprep.subr.mxu0 %v1298
    %1441 = vmatpush1.msra.mxu0 %v1297
    %1442 = vmatprep.subr.mxu0 %v1302
    %1443 = vmatpush1.msra.mxu0 %v1301
    %1444 = vmatprep.subr.mxu0 %v1306
    %1445 = vmatpush1.msra.mxu0 %v1305
    %1446 = vmatprep.subr.mxu0 %v1310
    %1447 = vmatpush1.msra.mxu0 %v1309
    %1448 = vmatprep.subr.mxu0 %v1314
    %1449 = vmatpush1.msra.mxu0 %v1313
    %1450 = vmatprep.subr.mxu0 %v1318
    %1451 = vmatpush1.msra.mxu0 %v1317
    %1452 = vmatprep.subr.mxu0 %v1322
    %1453 = vmatpush1.msra.mxu0 %v1321
    %1454 = vmatprep.subr.mxu0 %v1326
    %1455 = vmatpush1.msra.mxu0 %v1325
    %1456 = vmatprep.subr.mxu0 %v1330
    %1457 = vmatpush1.msra.mxu0 %v1329
    %1458 = vmatprep.subr.mxu0 %v1334
    %1459 = vmatpush1.msra.mxu0 %v1333
    %1460 = vmatprep.subr.mxu0 0.0
    %1461 = vmatpush1.msra.mxu0 0.0
    %1462 = vmatprep.subr.mxu0 0.0
    %1463 = vmatpush1.msra.mxu0 0.0
    %1464 = vmatprep.subr.mxu0 0.0
    %1465 = vmatpush1.msra.mxu0 0.0
    %1466 = vmatprep.subr.mxu0 0.0
    %1467 = vmatpush1.msra.mxu0 0.0
    %1468 = vmatprep.subr.mxu0 0.0
    %1469 = vmatpush1.msra.mxu0 0.0
    %1470 = vmatprep.subr.mxu0 0.0
    %1471 = vmatpush1.msra.mxu0 0.0
    %1472 = vmatprep.subr.mxu0 0.0
    %1473 = vmatpush1.msra.mxu0 0.0
    %1474 = vmatprep.subr.mxu0 0.0
    %1475 = vmatpush1.msra.mxu0 0.0
    %1476 = vmatprep.subr.mxu0 0.0
    %1477 = vmatpush1.msra.mxu0 0.0
    %1478 = vmatprep.subr.mxu0 0.0
    %1479 = vmatpush1.msra.mxu0 0.0
    %1480 = vmatprep.subr.mxu0 0.0
    %1481 = vmatpush1.msra.mxu0 0.0
    %1482 = vmatprep.subr.mxu0 0.0
    %1483 = vmatpush1.msra.mxu0 0.0
    %1484 = vmatprep.subr.mxu0 0.0
    %1485 = vmatpush1.msra.mxu0 0.0
    %1486 = vmatprep.subr.mxu0 0.0
    %1487 = vmatpush1.msra.mxu0 0.0
    %1488 = vmatprep.subr.mxu0 0.0
    %1489 = vmatpush1.msra.mxu0 0.0
    %1490 = vmatprep.subr.mxu0 0.0
    %1491 = vmatpush1.msra.mxu0 0.0
    %1492 = vmatprep.mubr.f32.mxu0 0.0
    %1493 = vmatmul.mubr.f32.gmra.mrb[0].mxu0 %v1270
    %v1494 = vpop.f32.mrb[0].mxu0
    %v1495 = vadd.f32 %v1348, %v1494
    %v1496 = vpop.f32.mrb[0].mxu0
    %v1497 = vadd.f32 %v1352, %v1496
    %1498 = vdwg.mxu0
    %v1499 = vmax.f32 %v1424, 0.0
    %v1500 = vmax.f32 %v1426, 0.0
    %v1501 = vmax.f32 %v1495, 0.0
    %v1502 = vmax.f32 %v1497, 0.0
    %v1503 = vld [vmem:[%s1] sm:$0xff]
    %v1504 = vld [vmem:[%s1 + $0x8] sm:$0xff]
    %v1505 = vld [vmem:[%s1 + $0x10] sm:$0xff]
    %v1506 = vld [vmem:[%s1 + $0x18] sm:$0xff]
    %v1507 = vld [vmem:[%s1 + $0x20] sm:$0xff]
    %v1508 = vld [vmem:[%s1 + $0x28] sm:$0xff]
    %v1509 = vld [vmem:[%s1 + $0x30] sm:$0xff]
    %v1510 = vld [vmem:[%s1 + $0x38] sm:$0xff]
    %v1511 = vld [vmem:[%s1 + $0x40] sm:$0xff]
    %v1512 = vld [vmem:[%s1 + $0x48] sm:$0xff]
    %v1513 = vld [vmem:[%s1 + $0x50] sm:$0xff]
    %v1514 = vld [vmem:[%s1 + $0x58] sm:$0xff]
    %v1515 = vld [vmem:[%s1 + $0x60] sm:$0xff]
    %v1516 = vld [vmem:[%s1 + $0x68] sm:$0xff]
    %v1517 = vld [vmem:[%s1 + $0x70] sm:$0xff]
    %v1518 = vld [vmem:[%s1 + $0x78] sm:$0xff]
    %v1519 = vld [vmem:[%s1 + $0x80] sm:$0xff]
    %v1520 = vld [vmem:[%s1 + $0x88] sm:$0xff]
    %v1521 = vld [vmem:[%s1 + $0x90] sm:$0xff]
    %v1522 = vld [vmem:[%s1 + $0x98] sm:$0xff]
    %v1523 = vld [vmem:[%s1 + $0xa0] sm:$0xff]
    %v1524 = vld [vmem:[%s1 + $0xa8] sm:$0xff]
    %v1525 = vld [vmem:[%s1 + $0xb0] sm:$0xff]
    %v1526 = vld [vmem:[%s1 + $0xb8] sm:$0xff]
    %v1527 = vld [vmem:[%s1 + $0xc0] sm:$0xff]
    %v1528 = vld [vmem:[%s1 + $0xc8] sm:$0xff]
    %v1529 = vld [vmem:[%s1 + $0xd0] sm:$0xff]
    %v1530 = vld [vmem:[%s1 + $0xd8] sm:$0xff]
    %v1531 = vld [vmem:[%s1 + $0xe0] sm:$0xff]
    %v1532 = vld [vmem:[%s1 + $0xe8] sm:$0xff]
    %v1533 = vld [vmem:[%s1 + $0xf0] sm:$0xff]
    %v1534 = vld [vmem:[%s1 + $0xf8] sm:$0xff]
    %v1535 = vld [vmem:[%s1 + $0x100] sm:$0xff]
    %v1536 = vld [vmem:[%s1 + $0x108] sm:$0xff]
    %v1537 = vld [vmem:[%s1 + $0x110] sm:$0xff]
    %v1538 = vld [vmem:[%s1 + $0x118] sm:$0xff]
    %v1539 = vld [vmem:[%s1 + $0x120] sm:$0xff]
    %v1540 = vld [vmem:[%s1 + $0x128] sm:$0xff]
    %v1541 = vld [vmem:[%s1 + $0x130] sm:$0xff]
    %v1542 = vld [vmem:[%s1 + $0x138] sm:$0xff]
    %v1543 = vld [vmem:[%s1 + $0x140] sm:$0xff]
    %v1544 = vld [vmem:[%s1 + $0x148] sm:$0xff]
    %v1545 = vld [vmem:[%s1 + $0x150] sm:$0xff]
    %v1546 = vld [vmem:[%s1 + $0x158] sm:$0xff]
    %v1547 = vld [vmem:[%s1 + $0x160] sm:$0xff]
    %v1548 = vld [vmem:[%s1 + $0x168] sm:$0xff]
    %v1549 = vld [vmem:[%s1 + $0x170] sm:$0xff]
    %v1550 = vld [vmem:[%s1 + $0x178] sm:$0xff]
    %v1551 = vld [vmem:[%s1 + $0x180] sm:$0xff]
    %v1552 = vld [vmem:[%s1 + $0x188] sm:$0xff]
    %v1553 = vld [vmem:[%s1 + $0x190] sm:$0xff]
    %v1554 = vld [vmem:[%s1 + $0x198] sm:$0xff]
    %v1555 = vld [vmem:[%s1 + $0x1a0] sm:$0xff]
    %v1556 = vld [vmem:[%s1 + $0x1a8] sm:$0xff]
    %v1557 = vld [vmem:[%s1 + $0x1b0] sm:$0xff]
    %v1558 = vld [vmem:[%s1 + $0x1b8] sm:$0xff]
    %v1559 = vld [vmem:[%s1 + $0x1c0] sm:$0xff]
    %v1560 = vld [vmem:[%s1 + $0x1c8] sm:$0xff]
    %v1561 = vld [vmem:[%s1 + $0x1d0] sm:$0xff]
    %v1562 = vld [vmem:[%s1 + $0x1d8] sm:$0xff]
    %v1563 = vld [vmem:[%s1 + $0x1e0] sm:$0xff]
    %v1564 = vld [vmem:[%s1 + $0x1e8] sm:$0xff]
    %v1565 = vld [vmem:[%s1 + $0x1f0] sm:$0xff]
    %v1566 = vld [vmem:[%s1 + $0x1f8] sm:$0xff]
    %v1567 = vld [vmem:[%s2 + $0x5] sm:$0x1]
    %v1569 = vlaneseq
    %v1570 = vshrl.u32 %v1569, 7
    %v1571 = vsub.s32 0, %v1570
    %v1572 = vrot.slane %v1567, %v1571
    %1574 = vmatprep.subr.mxu0 0.0
    %1575 = vmatpush1.msra.mxu0 %v1503
    %1576 = vmatprep.subr.mxu0 0.0
    %1577 = vmatpush1.msra.mxu0 %v1504
    %1578 = vmatprep.subr.mxu0 0.0
    %1579 = vmatpush1.msra.mxu0 %v1505
    %1580 = vmatprep.subr.mxu0 0.0
    %1581 = vmatpush1.msra.mxu0 %v1506
    %1582 = vmatprep.subr.mxu0 0.0
    %1583 = vmatpush1.msra.mxu0 %v1507
    %1584 = vmatprep.subr.mxu0 0.0
    %1585 = vmatpush1.msra.mxu0 %v1508
    %1586 = vmatprep.subr.mxu0 0.0
    %1587 = vmatpush1.msra.mxu0 %v1509
    %1588 = vmatprep.subr.mxu0 0.0
    %1589 = vmatpush1.msra.mxu0 %v1510
    %1590 = vmatprep.subr.mxu0 0.0
    %1591 = vmatpush1.msra.mxu0 %v1511
    %1592 = vmatprep.subr.mxu0 0.0
    %1593 = vmatpush1.msra.mxu0 %v1512
    %1594 = vmatprep.subr.mxu0 0.0
    %1595 = vmatpush1.msra.mxu0 %v1513
    %1596 = vmatprep.subr.mxu0 0.0
    %1597 = vmatpush1.msra.mxu0 %v1514
    %1598 = vmatprep.subr.mxu0 0.0
    %1599 = vmatpush1.msra.mxu0 %v1515
    %1600 = vmatprep.subr.mxu0 0.0
    %1601 = vmatpush1.msra.mxu0 %v1516
    %1602 = vmatprep.subr.mxu0 0.0
    %1603 = vmatpush1.msra.mxu0 %v1517
    %1604 = vmatprep.subr.mxu0 0.0
    %1605 = vmatpush1.msra.mxu0 %v1518
    %1606 = vmatprep.subr.mxu0 0.0
    %1607 = vmatpush1.msra.mxu0 %v1519
    %1608 = vmatprep.subr.mxu0 0.0
    %1609 = vmatpush1.msra.mxu0 %v1520
    %1610 = vmatprep.subr.mxu0 0.0
    %1611 = vmatpush1.msra.mxu0 %v1521
    %1612 = vmatprep.subr.mxu0 0.0
    %1613 = vmatpush1.msra.mxu0 %v1522
    %1614 = vmatprep.subr.mxu0 0.0
    %1615 = vmatpush1.msra.mxu0 %v1523
    %1616 = vmatprep.subr.mxu0 0.0
    %1617 = vmatpush1.msra.mxu0 %v1524
    %1618 = vmatprep.subr.mxu0 0.0
    %1619 = vmatpush1.msra.mxu0 %v1525
    %1620 = vmatprep.subr.mxu0 0.0
    %1621 = vmatpush1.msra.mxu0 %v1526
    %1622 = vmatprep.subr.mxu0 0.0
    %1623 = vmatpush1.msra.mxu0 %v1527
    %1624 = vmatprep.subr.mxu0 0.0
    %1625 = vmatpush1.msra.mxu0 %v1528
    %1626 = vmatprep.subr.mxu0 0.0
    %1627 = vmatpush1.msra.mxu0 %v1529
    %1628 = vmatprep.subr.mxu0 0.0
    %1629 = vmatpush1.msra.mxu0 %v1530
    %1630 = vmatprep.subr.mxu0 0.0
    %1631 = vmatpush1.msra.mxu0 %v1531
    %1632 = vmatprep.subr.mxu0 0.0
    %1633 = vmatpush1.msra.mxu0 %v1532
    %1634 = vmatprep.subr.mxu0 0.0
    %1635 = vmatpush1.msra.mxu0 %v1533
    %1636 = vmatprep.subr.mxu0 0.0
    %1637 = vmatpush1.msra.mxu0 %v1534
    %1638 = vmatprep.mubr.f32.mxu0 %v1500
    %1639 = vmatmul.mubr.f32.gmra.mrb[0].mxu0 %v1499
    %v1640 = vpop.f32.mrb[0].mxu0
    %v1641 = vadd.f32 %v1572, %v1640
    %v1642 = vpop.f32.mrb[0].mxu0
    %1643 = vdwg.mxu0
    %1644 = vmatprep.subr.mxu0 0.0
    %1645 = vmatpush1.msra.mxu0 %v1535
    %1646 = vmatprep.subr.mxu0 0.0
    %1647 = vmatpush1.msra.mxu0 %v1536
    %1648 = vmatprep.subr.mxu0 0.0
    %1649 = vmatpush1.msra.mxu0 %v1537
    %1650 = vmatprep.subr.mxu0 0.0
    %1651 = vmatpush1.msra.mxu0 %v1538
    %1652 = vmatprep.subr.mxu0 0.0
    %1653 = vmatpush1.msra.mxu0 %v1539
    %1654 = vmatprep.subr.mxu0 0.0
    %1655 = vmatpush1.msra.mxu0 %v1540
    %1656 = vmatprep.subr.mxu0 0.0
    %1657 = vmatpush1.msra.mxu0 %v1541
    %1658 = vmatprep.subr.mxu0 0.0
    %1659 = vmatpush1.msra.mxu0 %v1542
    %1660 = vmatprep.subr.mxu0 0.0
    %1661 = vmatpush1.msra.mxu0 %v1543
    %1662 = vmatprep.subr.mxu0 0.0
    %1663 = vmatpush1.msra.mxu0 %v1544
    %1664 = vmatprep.subr.mxu0 0.0
    %1665 = vmatpush1.msra.mxu0 %v1545
    %1666 = vmatprep.subr.mxu0 0.0
    %1667 = vmatpush1.msra.mxu0 %v1546
    %1668 = vmatprep.subr.mxu0 0.0
    %1669 = vmatpush1.msra.mxu0 %v1547
    %1670 = vmatprep.subr.mxu0 0.0
    %1671 = vmatpush1.msra.mxu0 %v1548
    %1672 = vmatprep.subr.mxu0 0.0
    %1673 = vmatpush1.msra.mxu0 %v1549
    %1674 = vmatprep.subr.mxu0 0.0
    %1675 = vmatpush1.msra.mxu0 %v1550
    %1676 = vmatprep.subr.mxu0 0.0
    %1677 = vmatpush1.msra.mxu0 %v1551
    %1678 = vmatprep.subr.mxu0 0.0
    %1679 = vmatpush1.msra.mxu0 %v1552
    %1680 = vmatprep.subr.mxu0 0.0
    %1681 = vmatpush1.msra.mxu0 %v1553
    %1682 = vmatprep.subr.mxu0 0.0
    %1683 = vmatpush1.msra.mxu0 %v1554
    %1684 = vmatprep.subr.mxu0 0.0
    %1685 = vmatpush1.msra.mxu0 %v1555
    %1686 = vmatprep.subr.mxu0 0.0
    %1687 = vmatpush1.msra.mxu0 %v1556
    %1688 = vmatprep.subr.mxu0 0.0
    %1689 = vmatpush1.msra.mxu0 %v1557
    %1690 = vmatprep.subr.mxu0 0.0
    %1691 = vmatpush1.msra.mxu0 %v1558
    %1692 = vmatprep.subr.mxu0 0.0
    %1693 = vmatpush1.msra.mxu0 %v1559
    %1694 = vmatprep.subr.mxu0 0.0
    %1695 = vmatpush1.msra.mxu0 %v1560
    %1696 = vmatprep.subr.mxu0 0.0
    %1697 = vmatpush1.msra.mxu0 %v1561
    %1698 = vmatprep.subr.mxu0 0.0
    %1699 = vmatpush1.msra.mxu0 %v1562
    %1700 = vmatprep.subr.mxu0 0.0
    %1701 = vmatpush1.msra.mxu0 %v1563
    %1702 = vmatprep.subr.mxu0 0.0
    %1703 = vmatpush1.msra.mxu0 %v1564
    %1704 = vmatprep.subr.mxu0 0.0
    %1705 = vmatpush1.msra.mxu0 %v1565
    %1706 = vmatprep.subr.mxu0 0.0
    %1707 = vmatpush1.msra.mxu0 %v1566
    %1708 = vmatprep.mubr.f32.mxu0 %v1502
    %1709 = vmatmul.mubr.f32.gmra.mrb[0].mxu0 %v1501
    %v1710 = vpop.f32.mrb[0].mxu0
    %v1711 = vadd.f32 %v1641, %v1710
    %v1712 = vpop.f32.mrb[0].mxu0
    %1713 = vdwg.mxu0
    %1714 = vst [vmem:[#allocation7] sm:$0x3] %v1711
    // Predicated region
    $region18: #{simclr_forward.2} parent=1 // pred_check
      _
    $region19: #{simclr_forward.2} parent=1 // pred_check_branch
      %1716 = sbr.rel (0) target = $region21
    $region20: #{simclr_forward.2} parent=1 // pred_region
      %s1718 = ssub.s32 32, 32
      %1719 = vsyncadd [#allocation8], %s1718
      %s1721 = sshll.u32 [#allocation7], 4
      %s1722 = int_to_ptr.vmem [resolvable:$true] %s1721
      %1724 = dma.vmem_to_hbm [thread:$0]  %s1722, 32, %s5, [#allocation8]
    $region21: #{simclr_forward.2} parent=1 // pred_fallthru
      _
    // Predicated region
    $region22: #{simclr_forward.2} parent=1 // pred_check
      _
    $region23: #{simclr_forward.2} parent=1 // pred_check_branch
      %1726 = sbr.rel (0) target = $region25
    $region24: #{simclr_forward.2} parent=1 // pred_region
      %1727 = dma.done [#allocation8], 32
    $region25: #{simclr_forward.2} parent=1 // pred_fallthru
      _
    %1728 = vsyncpa [#allocation8], 1

</llo_original>
